<compile_context>
chip_gen: v6e
topology: v6e:2x2x1
jax: 0.10.0
libtpu: 0.0.40
codegen_flags: <defaults>
</compile_context>

<pallas_src>
import math

import numpy as np
import jax
import jax.numpy as jnp
from jax.experimental import pallas as pl
from jax.experimental.pallas import tpu as pltpu


def _round_up(x, m):
    return ((x + m - 1) // m) * m


def gcn_kernel(x_k_ref, x_i_ref, w_ref, adj_ref, dnorm_ref, bias_ref,
               out_ref, acc_ref):
    k = pl.program_id(1)

    @pl.when(k == 0)
    def _():
        acc_ref[...] = jnp.zeros_like(acc_ref)

    # mapped_k = x_k @ W : recomputed per (i, k) step.  The x_k stream is only
    # tk x f_in bf16 bytes (a few % of the adj tile), far cheaper than
    # streaming a precomputed mapped (tk x f_out_p).  bf16 operands -> single
    # MXU pass; result downcast to bf16 so the big dot below stays bf16.
    mapped_k = jnp.dot(x_k_ref[...], w_ref[...],
                       preferred_element_type=jnp.float32).astype(jnp.bfloat16)

    adj_tile = adj_ref[...]
    if adj_tile.dtype != jnp.bfloat16:      # int8 / fp8 adj storage option
        adj_tile = adj_tile.astype(jnp.bfloat16)

    # Dominant matmul: bf16 x bf16 on the MXU, f32 accumulation in VMEM.
    acc_ref[...] += jnp.dot(adj_tile, mapped_k,
                            preferred_element_type=jnp.float32)

    # Epilogue on the last reduction step: mapped_i - acc * dnorm + bias.
    @pl.when(k == pl.num_programs(1) - 1)
    def _():
        mapped_i = jnp.dot(x_i_ref[...], w_ref[...],
                           preferred_element_type=jnp.float32)
        out_ref[...] = (mapped_i - acc_ref[...] * dnorm_ref[...]
                        + bias_ref[...]).astype(out_ref.dtype)


def graph_convolution(x, weight, adj, degree_norm, bias=None, *,
                      tile_m=256, tile_k=1024, adj_dtype=jnp.bfloat16):
    """GCN mean-subtract forward: (x@W) - (adj @ (x@W)) * degree_norm + bias.

    adj_dtype: bf16 default (exact for {0,1} adjacency, works on all chips);
    int8 on v5e/v6e or float8_e4m3 on v7x halves the dominant HBM stream again
    (the kernel upcasts the tile to bf16 before the dot).  Use f32/bf16 for
    weighted (non-binary) graphs.
    """
    N, f_in = x.shape
    f_out = weight.shape[1]
    assert adj.shape == (N, N)
    assert degree_norm.shape == (N, 1)
    if bias is None:
        bias = jnp.zeros((1, f_out), jnp.float32)
    bias = jnp.reshape(bias, (1, f_out))

    # Lane-dense output: pad F_out to a multiple of 128 (zeros), slice after.
    f_out_p = _round_up(f_out, 128)

    # Tile selection: clamp to the (padded) problem size; keep tk a multiple
    # of tm so a single padded N serves both the row and reduction tilings.
    n128 = _round_up(N, 128)
    tm = max(128, min(tile_m, n128))
    tk = max(tm, min(tile_k, n128))
    tk -= tk % tm
    n_pad = _round_up(N, tk)
    # Prefer >= 2 row tiles so the "parallel" i-axis can split across v7x's
    # two TensorCores (one idle TC on small graphs is a straight 2x loss).
    if (n_pad // tm) < 2 and (n_pad // 128) >= 2:
        half = n_pad // 2
        tm = half if half % 128 == 0 else 128

    grid = (n_pad // tm, n_pad // tk)   # (row tiles i, reduction tiles k)

    # --- wrapper-side data prep (cast BEFORE pad; skip when unnecessary) ----
    x_p = x.astype(jnp.bfloat16)
    if n_pad != N:
        x_p = jnp.pad(x_p, ((0, n_pad - N), (0, 0)))
    w_p = weight.astype(jnp.bfloat16)
    if f_out_p != f_out:
        w_p = jnp.pad(w_p, ((0, 0), (0, f_out_p - f_out)))
    b_p = bias.astype(jnp.float32)
    if f_out_p != f_out:
        b_p = jnp.pad(b_p, ((0, 0), (0, f_out_p - f_out)))
    # TODO(synk): for repeated calls on a static graph, precompute/cache the
    # padded narrow-dtype adj outside the hot path (it dominates wrapper-side
    # HBM traffic).  Here we at least cast first so the padded O(N^2) copy is
    # written at adj_dtype width, and skip both steps when already done.
    adj_p = adj if adj.dtype == adj_dtype else adj.astype(adj_dtype)
    if n_pad != N:
        adj_p = jnp.pad(adj_p, ((0, n_pad - N), (0, n_pad - N)))
    dn_p = degree_norm.astype(jnp.float32)
    if n_pad != N:
        dn_p = jnp.pad(dn_p, ((0, n_pad - N), (0, 0)))

    adj_itemsize = np.dtype(adj_dtype).itemsize

    # Advisory cost estimate reflecting actual streamed bytes / padded shapes.
    cost = pl.CostEstimate(
        flops=(2 * n_pad * n_pad * f_out_p                       # adj @ mapped_k
               + 2 * (grid[0] + 1) * n_pad * f_in * f_out_p),    # mapped_k / mapped_i
        transcendentals=0,
        bytes_accessed=(n_pad * n_pad * adj_itemsize             # adj stream
                        + (grid[0] + 1) * n_pad * f_in * 2       # x_k restream + x_i
                        + n_pad * f_out_p * 4                    # output
                        + n_pad * 4                              # degree_norm
                        + f_in * f_out_p * 2 + f_out_p * 4),     # W, bias
    )

    # VMEM need: double-buffered tiles + resident f32 accumulator.  Narrow
    # blocks (x, degree_norm) pad their lane dim to 128 in VMEM - count that.
    vmem_need = (2 * tm * tk * adj_itemsize              # adj tile x2 buffers
                 + 2 * tk * max(f_in, 128) * 2           # x_k x2 (bf16, lane-pad)
                 + 2 * tm * max(f_in, 128) * 2           # x_i x2
                 + 2 * tm * f_out_p * 4                  # out tile x2
                 + tm * f_out_p * 4                      # f32 accumulator
                 + 2 * tm * 128 * 4                      # degree_norm (lane-pad)
                 + 2 * (f_in * f_out_p * 2 + 8 * f_out_p * 4))   # W, bias
    vmem_limit = int(min(max(2 * vmem_need, 16 * 1024 * 1024),
                         48 * 1024 * 1024))

    out_p = pl.pallas_call(
        gcn_kernel,
        out_shape=jax.ShapeDtypeStruct((n_pad, f_out_p), jnp.float32),
        grid_spec=pltpu.PrefetchScalarGridSpec(
            num_scalar_prefetch=0,
            grid=grid,
            in_specs=[
                pl.BlockSpec((tk, f_in), lambda i, k: (k, 0)),       # x (k tile)
                pl.BlockSpec((tm, f_in), lambda i, k: (i, 0)),       # x (i tile)
                pl.BlockSpec((f_in, f_out_p), lambda i, k: (0, 0)),  # weight (resident)
                # NOTE: add pipeline_mode=pl.Buffered(3) here if a trace shows
                # exposed adj DMA at k-step boundaries (cheap with narrow dtype).
                pl.BlockSpec((tm, tk), lambda i, k: (i, k)),         # adj
                pl.BlockSpec((tm, 1), lambda i, k: (i, 0)),          # degree_norm
                pl.BlockSpec((1, f_out_p), lambda i, k: (0, 0)),     # bias (resident)
            ],
            out_specs=pl.BlockSpec((tm, f_out_p), lambda i, k: (i, 0)),
            scratch_shapes=[pltpu.VMEM((tm, f_out_p), jnp.float32)],
        ),
        compiler_params=pltpu.CompilerParams(
            dimension_semantics=("parallel", "arbitrary"),
            vmem_limit_bytes=vmem_limit,
        ),
        cost_estimate=cost,
    )(x_p, x_p, w_p, adj_p, dn_p, b_p)

    return out_p[:N, :f_out]


if __name__ == "__main__":
    # Small shapes, chosen so the grid has multiple row AND reduction tiles
    # (N=300, tm=128, tk=256 -> n_pad=512, grid (4, 2)) and N-padding is
    # exercised (padded rows/cols are zero and sliced off).
    N = 300
    in_features = 32
    out_features = 64

    key = jax.random.PRNGKey(0)
    k_x, k_adj, k_w, k_b = jax.random.split(key, 4)

    # Node features.
    x = jax.random.normal(k_x, (N, in_features), dtype=jnp.float32)

    # Symmetric binary adjacency (no self loops) + degree normalization 1/deg.
    a = (jax.random.uniform(k_adj, (N, N)) < 0.1).astype(jnp.float32)
    adj = jnp.triu(a, 1)
    adj = adj + adj.T
    deg = jnp.sum(adj, axis=1, keepdims=True)
    degree_norm = 1.0 / jnp.maximum(deg, 1.0)          # (N, 1)

    # Parameters: uniform(-stdv, stdv) like reset_parameters().
    stdv = 1.0 / math.sqrt(out_features)
    weight = jax.random.uniform(
        k_w, (in_features, out_features), minval=-stdv, maxval=stdv,
        dtype=jnp.float32)
    bias = jax.random.uniform(
        k_b, (1, out_features), minval=-stdv, maxval=stdv, dtype=jnp.float32)

    out = graph_convolution(x, weight, adj, degree_norm, bias,
                            tile_m=128, tile_k=256)
    out = jax.block_until_ready(out)

    # Pure-JAX reference (same math as the PyTorch forward), f32 throughout.
    mapped = x @ weight
    ref = mapped - (adj @ mapped) * degree_norm + bias
    assert out.shape == (N, out_features)
    # bf16 MXU operands (f32 accumulation) -> ~1e-2-level relative tolerance.
    assert jnp.allclose(out, ref, atol=3e-2, rtol=3e-2), "mismatch vs reference"

    print("KERNEL_OK")
</pallas_src>

<mosaic_0001>
module attributes {stable_mosaic.version = 11 : i64} {
  func.func @gcn_kernel(%arg0: i32, %arg1: i32, %arg2: memref<256x32xbf16, #tpu.memory_space<vmem>>, %arg3: memref<128x32xbf16, #tpu.memory_space<vmem>>, %arg4: memref<32x128xbf16, #tpu.memory_space<vmem>>, %arg5: memref<128x256xbf16, #tpu.memory_space<vmem>>, %arg6: memref<128x1xf32, #tpu.memory_space<vmem>>, %arg7: memref<1x128xf32, #tpu.memory_space<vmem>>, %arg8: memref<128x128xf32, #tpu.memory_space<vmem>>, %arg9: memref<128x128xf32, #tpu.memory_space<vmem>>) attributes {dimension_semantics = [#tpu.dimension_semantics<parallel>, #tpu.dimension_semantics<arbitrary>], iteration_bounds = array<i64: 4, 2>, scalar_prefetch = 0 : i64, scratch_operands = 1 : i64, tpu.core_type = #tpu.core_type<tc>, window_params = [{transform_indices = @transform_0, window_bounds = array<i64: 256, 32>}, {transform_indices = @transform_1, window_bounds = array<i64: 128, 32>}, {pipeline_mode = #tpu.pipeline_mode<synchronous>, transform_indices = @transform_2, window_bounds = array<i64: 32, 128>}, {transform_indices = @transform_3, window_bounds = array<i64: 128, 256>}, {transform_indices = @transform_4, window_bounds = array<i64: 128, 1>}, {pipeline_mode = #tpu.pipeline_mode<synchronous>, transform_indices = @transform_5, window_bounds = array<i64: 1, 128>}, {transform_indices = @transform_6, window_bounds = array<i64: 128, 128>}]} {
    %c0_i32 = arith.constant 0 : i32
    %0 = arith.cmpi eq, %arg1, %c0_i32 : i32
    %1 = arith.extui %0 : i1 to i32
    %c0_i32_0 = arith.constant 0 : i32
    %2 = arith.cmpi ne, %1, %c0_i32_0 : i32
    scf.if %2 {
      %cst_12 = arith.constant 0.000000e+00 : f32
      %15 = vector.broadcast %cst_12 : f32 to vector<128x128xf32>
      %c0_13 = arith.constant 0 : index
      %c0_14 = arith.constant 0 : index
      %16 = vector.load %arg9[%c0_13, %c0_14] : memref<128x128xf32, #tpu.memory_space<vmem>>, vector<128x128xf32>
      tpu.vector_store %arg9[%c0_13, %c0_14], %15 {strides = array<i32>} : memref<128x128xf32, #tpu.memory_space<vmem>>, vector<128x128xf32>,
    } else {
    }
    %c0 = arith.constant 0 : index
    %c0_1 = arith.constant 0 : index
    %3 = vector.load %arg2[%c0, %c0_1] : memref<256x32xbf16, #tpu.memory_space<vmem>>, vector<256x32xbf16>
    %c0_2 = arith.constant 0 : index
    %c0_3 = arith.constant 0 : index
    %4 = vector.load %arg4[%c0_2, %c0_3] : memref<32x128xbf16, #tpu.memory_space<vmem>>, vector<32x128xbf16>
    %cst = arith.constant dense<0.000000e+00> : vector<256x128xf32>
    %5 = tpu.matmul %3, %4, %cst {dimension_numbers = #tpu.dot_dimension_numbers<[1], [0], [0], [1], [0, 0, 1, 1], [], []>} : vector<256x32xbf16>, vector<32x128xbf16>, vector<256x128xf32> -> vector<256x128xf32>
    %6 = arith.truncf %5 : vector<256x128xf32> to vector<256x128xbf16>
    %c0_4 = arith.constant 0 : index
    %c0_5 = arith.constant 0 : index
    %7 = vector.load %arg5[%c0_4, %c0_5] : memref<128x256xbf16, #tpu.memory_space<vmem>>, vector<128x256xbf16>
    %c0_6 = arith.constant 0 : index
    %c0_7 = arith.constant 0 : index
    %8 = vector.load %arg9[%c0_6, %c0_7] : memref<128x128xf32, #tpu.memory_space<vmem>>, vector<128x128xf32>
    %cst_8 = arith.constant dense<0.000000e+00> : vector<128x128xf32>
    %9 = tpu.matmul %7, %6, %cst_8 {dimension_numbers = #tpu.dot_dimension_numbers<[1], [0], [0], [1], [0, 0, 1, 1], [], []>} : vector<128x256xbf16>, vector<256x128xbf16>, vector<128x128xf32> -> vector<128x128xf32>
    %10 = arith.addf %8, %9 : vector<128x128xf32>
    %c0_9 = arith.constant 0 : index
    %c0_10 = arith.constant 0 : index
    %11 = vector.load %arg9[%c0_9, %c0_10] : memref<128x128xf32, #tpu.memory_space<vmem>>, vector<128x128xf32>
    tpu.vector_store %arg9[%c0_9, %c0_10], %10 {strides = array<i32>} : memref<128x128xf32, #tpu.memory_space<vmem>>, vector<128x128xf32>,
    %c1_i32 = arith.constant 1 : i32
    %12 = arith.cmpi eq, %arg1, %c1_i32 : i32
    %13 = arith.extui %12 : i1 to i32
    %c0_i32_11 = arith.constant 0 : i32
    %14 = arith.cmpi ne, %13, %c0_i32_11 : i32
    scf.if %14 {
      %c0_12 = arith.constant 0 : index
      %c0_13 = arith.constant 0 : index
      %15 = vector.load %arg3[%c0_12, %c0_13] : memref<128x32xbf16, #tpu.memory_space<vmem>>, vector<128x32xbf16>
      %c0_14 = arith.constant 0 : index
      %c0_15 = arith.constant 0 : index
      %16 = vector.load %arg4[%c0_14, %c0_15] : memref<32x128xbf16, #tpu.memory_space<vmem>>, vector<32x128xbf16>
      %cst_16 = arith.constant dense<0.000000e+00> : vector<128x128xf32>
      %17 = tpu.matmul %15, %16, %cst_16 {dimension_numbers = #tpu.dot_dimension_numbers<[1], [0], [0], [1], [0, 0, 1, 1], [], []>} : vector<128x32xbf16>, vector<32x128xbf16>, vector<128x128xf32> -> vector<128x128xf32>
      %c0_17 = arith.constant 0 : index
      %c0_18 = arith.constant 0 : index
      %18 = vector.load %arg9[%c0_17, %c0_18] : memref<128x128xf32, #tpu.memory_space<vmem>>, vector<128x128xf32>
      %c0_19 = arith.constant 0 : index
      %c0_20 = arith.constant 0 : index
      %19 = vector.load %arg6[%c0_19, %c0_20] : memref<128x1xf32, #tpu.memory_space<vmem>>, vector<128x1xf32>
      %20 = vector.broadcast %19 : vector<128x1xf32> to vector<128x128xf32>
      %21 = arith.mulf %18, %20 : vector<128x128xf32>
      %22 = arith.subf %17, %21 : vector<128x128xf32>
      %c0_21 = arith.constant 0 : index
      %c0_22 = arith.constant 0 : index
      %23 = vector.load %arg7[%c0_21, %c0_22] : memref<1x128xf32, #tpu.memory_space<vmem>>, vector<1x128xf32>
      %24 = vector.broadcast %23 : vector<1x128xf32> to vector<128x128xf32>
      %25 = arith.addf %22, %24 : vector<128x128xf32>
      %c0_23 = arith.constant 0 : index
      %c0_24 = arith.constant 0 : index
      %26 = vector.load %arg8[%c0_23, %c0_24] : memref<128x128xf32, #tpu.memory_space<vmem>>, vector<128x128xf32>
      tpu.vector_store %arg8[%c0_23, %c0_24], %25 {strides = array<i32>} : memref<128x128xf32, #tpu.memory_space<vmem>>, vector<128x128xf32>,
    } else {
    }
    return
  }
  func.func @transform_0(%arg0: i32, %arg1: i32) -> (i32, i32) {
    %c0_i32 = arith.constant 0 : i32
    %c0_i32_0 = arith.constant 0 : i32
    return %arg1, %c0_i32 : i32, i32
  }
  func.func @transform_1(%arg0: i32, %arg1: i32) -> (i32, i32) {
    %c0_i32 = arith.constant 0 : i32
    %c0_i32_0 = arith.constant 0 : i32
    return %arg0, %c0_i32 : i32, i32
  }
  func.func @transform_2(%arg0: i32, %arg1: i32) -> (i32, i32) {
    %c0_i32 = arith.constant 0 : i32
    %c0_i32_0 = arith.constant 0 : i32
    %c0_i32_1 = arith.constant 0 : i32
    return %c0_i32, %c0_i32_0 : i32, i32
  }
  func.func @transform_3(%arg0: i32, %arg1: i32) -> (i32, i32) {
    %c0_i32 = arith.constant 0 : i32
    return %arg0, %arg1 : i32, i32
  }
  func.func @transform_4(%arg0: i32, %arg1: i32) -> (i32, i32) {
    %c0_i32 = arith.constant 0 : i32
    %c0_i32_0 = arith.constant 0 : i32
    return %arg0, %c0_i32 : i32, i32
  }
  func.func @transform_5(%arg0: i32, %arg1: i32) -> (i32, i32) {
    %c0_i32 = arith.constant 0 : i32
    %c0_i32_0 = arith.constant 0 : i32
    %c0_i32_1 = arith.constant 0 : i32
    return %c0_i32, %c0_i32_0 : i32, i32
  }
  func.func @transform_6(%arg0: i32, %arg1: i32) -> (i32, i32) {
    %c0_i32 = arith.constant 0 : i32
    %c0_i32_0 = arith.constant 0 : i32
    return %arg0, %c0_i32 : i32, i32
  }
}

</mosaic_0001>

<llo_original>
// kernel: tpu_custom_call.1
$region0: #{tpu_custom_call.1}
  #allocation0 [shape = 'u32[]', space=smem, size = 0x4, offset = 0x4, fixed_abs, tag = 'smem constant byte address 0x4 - core index']
  #allocation1 [shape = 'u32[144,128]{1,0:T(1,128)}', space=vmem, size = 0x12000, scoped, tag = 'internal scratch']
  #allocation2 [shape = 'f32[128,128]{1,0:T(8,128)}', space=vmem, size = 0x10000, scoped, tag = 'scratch operand']
  %s0 = inlined_call_operand.vmem [shape: bf16[512,32], index: 0, kind: input, shape index: {}]
  %s1 = inlined_call_operand.vmem [shape: bf16[512,32], index: 1, kind: input, shape index: {}]
  %s2 = inlined_call_operand.vmem [shape: bf16[32,128], index: 2, kind: input, shape index: {}]
  %s3 = inlined_call_operand.vmem [shape: bf16[512,512], index: 3, kind: input, shape index: {}]
  %s4 = inlined_call_operand.vmem [shape: f32[512,1], index: 4, kind: input, shape index: {}]
  %s5 = inlined_call_operand.vmem [shape: f32[1,128], index: 5, kind: input, shape index: {}]
  %s6 = inlined_call_operand.hbm [shape: f32[512,128], index: 6, kind: output, shape index: {}]
  %s7 = sld [smem:[#allocation0]]
  $region103: #{tpu_custom_call.1} parent=0
    _
  %s9 = ssub.s32 1, %s7
  %s10 = scalar_select 0, %s9, %s7
  $region1: #{tpu_custom_call.1} parent=0
    #allocation3 [shape = 'u8[131072]{0}', space=vmem, size = 0x20000, scoped, tag = 'input window, operand 3']
    #allocation4 [shape = 'u8[131072]{0}', space=vmem, size = 0x20000, scoped, tag = 'output window, operand 0']
    #allocation5 [shape = 's32[2]{0}', space=sflag, size = 0x8, scoped, tag = 'scoped memory for tpu_custom_call.1']
    %11 = vsyncpa [#allocation5], 0
    %s12 = scalar_lea.sflag [#allocation5], 1
    %13 = vsyncpa %s12, 0
    loop: start=0, step=1, limit=10
    $region2: #{tpu_custom_call.1} parent=1 // loop_pre_header
      _
    $region3: #{tpu_custom_call.1} parent=1 // loop_header
      %s15 = sphi 0, %s19
      %p16 = scmp.ge.s32.totalorder %s15, 10
      %s22 = sphi 0, %s34
      %s23 = sphi 0, %s30
      %s24 = sphi 0, %s22
      %s25 = sphi 0, %s23
      %s26 = sphi 0, %s24
      %s27 = sphi 0, %s25
      %s37 = sphi 0, %s39
      %s40 = sphi 0, %s37
      %s41 = sphi 0, %s40
      %s57 = sphi 0, %s41
      %s63 = sphi 0, %s65
      %s66 = sphi 0, %s63
      %s67 = sphi 0, %s66
      %s83 = sphi 0, %s67
      %s87 = sphi 0, %s87
      %s89 = sphi 0, %s87
      %s90 = sphi 0, %s89
      %s104 = sphi 0, %s90
      %s112 = sphi 0, %s114
      %s115 = sphi 0, %s112
      %s116 = sphi 0, %s115
      %s132 = sphi 0, %s116
      %s138 = sphi 0, %s140
      %s141 = sphi 0, %s138
      %s142 = sphi 0, %s141
      %s158 = sphi 0, %s142
      %s162 = sphi 0, %s162
      %s164 = sphi 0, %s162
      %s165 = sphi 0, %s164
      %s179 = sphi 0, %s165
      %s185 = sphi 0, %s187
      %s188 = sphi 0, %s185
      %s189 = sphi 0, %s188
      %s205 = sphi 0, %s189
    $region4: #{tpu_custom_call.1} parent=1 // loop_header_branch
      %18 = sbr.rel (%p16) target = $region8
    $region5: #{tpu_custom_call.1} parent=1 // loop_body
      %s20 = ssub.s32 %s15, 1
      %s21 = ssub.s32 %s15, 2
      %s28 = sadd.s32 1, %s23
      %p29 = scmp.ge.s32.totalorder %s28, 2
      %s30 = scalar_select %p29, 0, %s28
      %s31 = sadd.s32 1, %s22
      %s32 = scalar_select %p29, %s31, %s22
      %p33 = scmp.ge.s32.totalorder %s32, 4
      %s34 = scalar_select %p33, 0, %s32
      %s35 = ssub.s32 %s23, %s30
      %p36 = scmp.eq.s32.totalorder %s35, 0
      %s38 = sadd.s32 %s37, 1
      %s39 = scalar_select %p36, %s37, %s38
      %p42 = pneg %p36
      %p43 = scmp.eq.s32.totalorder %s15, 7
      %p44 = por %p42, %p43
      %p45 = scmp.ne.s32.totalorder %s37, %s40
      %p46 = scmp.eq.s32.totalorder %s15, 0
      %p47 = por %p45, %p46
      %p48 = scmp.ne.s32.totalorder %s37, %s40
      %p49 = scmp.eq.s32.totalorder %s20, 7
      %p50 = por %p48, %p49
      %p51 = scmp.ne.s32.totalorder %s40, %s41
      %p52 = scmp.eq.s32.totalorder %s20, 0
      %p53 = por %p51, %p52
      %p54 = scmp.ne.s32.totalorder %s40, %s41
      %p55 = scmp.eq.s32.totalorder %s21, 7
      %p56 = por %p54, %p55
      %p58 = scmp.ne.s32.totalorder %s41, %s57
      %p59 = scmp.eq.s32.totalorder %s21, 0
      %p60 = por %p58, %p59
      %s61 = ssub.s32 %s22, %s34
      %p62 = scmp.eq.s32.totalorder %s61, 0
      %s64 = sadd.s32 %s63, 1
      %s65 = scalar_select %p62, %s63, %s64
      %p68 = pneg %p62
      %p69 = scmp.eq.s32.totalorder %s15, 7
      %p70 = por %p68, %p69
      %p71 = scmp.ne.s32.totalorder %s63, %s66
      %p72 = scmp.eq.s32.totalorder %s15, 0
      %p73 = por %p71, %p72
      %p74 = scmp.ne.s32.totalorder %s63, %s66
      %p75 = scmp.eq.s32.totalorder %s20, 7
      %p76 = por %p74, %p75
      %p77 = scmp.ne.s32.totalorder %s66, %s67
      %p78 = scmp.eq.s32.totalorder %s20, 0
      %p79 = por %p77, %p78
      %p80 = scmp.ne.s32.totalorder %s66, %s67
      %p81 = scmp.eq.s32.totalorder %s21, 7
      %p82 = por %p80, %p81
      %p84 = scmp.ne.s32.totalorder %s67, %s83
      %p85 = scmp.eq.s32.totalorder %s21, 0
      %p86 = por %p84, %p85
      %s88 = sadd.s32 %s87, 1
      %p91 = scmp.eq.s32.totalorder %s15, 7
      %p92 = scmp.ne.s32.totalorder %s87, %s89
      %p93 = scmp.eq.s32.totalorder %s15, 0
      %p94 = por %p92, %p93
      %p95 = scmp.ne.s32.totalorder %s87, %s89
      %p96 = scmp.eq.s32.totalorder %s20, 7
      %p97 = por %p95, %p96
      %p98 = scmp.ne.s32.totalorder %s89, %s90
      %p99 = scmp.eq.s32.totalorder %s20, 0
      %p100 = por %p98, %p99
      %p101 = scmp.ne.s32.totalorder %s89, %s90
      %p102 = scmp.eq.s32.totalorder %s21, 7
      %p103 = por %p101, %p102
      %p105 = scmp.ne.s32.totalorder %s90, %s104
      %p106 = scmp.eq.s32.totalorder %s21, 0
      %p107 = por %p105, %p106
      %s108 = ssub.s32 %s22, %s34
      %s109 = ssub.s32 %s23, %s30
      %s110 = sor.u32 %s108, %s109
      %p111 = scmp.eq.s32.totalorder %s110, 0
      %s113 = sadd.s32 %s112, 1
      %s114 = scalar_select %p111, %s112, %s113
      %p117 = pneg %p111
      %p118 = scmp.eq.s32.totalorder %s15, 7
      %p119 = por %p117, %p118
      %p120 = scmp.ne.s32.totalorder %s112, %s115
      %p121 = scmp.eq.s32.totalorder %s15, 0
      %p122 = por %p120, %p121
      %p123 = scmp.ne.s32.totalorder %s112, %s115
      %p124 = scmp.eq.s32.totalorder %s20, 7
      %p125 = por %p123, %p124
      %p126 = scmp.ne.s32.totalorder %s115, %s116
      %p127 = scmp.eq.s32.totalorder %s20, 0
      %p128 = por %p126, %p127
      %p129 = scmp.ne.s32.totalorder %s115, %s116
      %p130 = scmp.eq.s32.totalorder %s21, 7
      %p131 = por %p129, %p130
      %p133 = scmp.ne.s32.totalorder %s116, %s132
      %p134 = scmp.eq.s32.totalorder %s21, 0
      %p135 = por %p133, %p134
      %s136 = ssub.s32 %s22, %s34
      %p137 = scmp.eq.s32.totalorder %s136, 0
      %s139 = sadd.s32 %s138, 1
      %s140 = scalar_select %p137, %s138, %s139
      %p143 = pneg %p137
      %p144 = scmp.eq.s32.totalorder %s15, 7
      %p145 = por %p143, %p144
      %p146 = scmp.ne.s32.totalorder %s138, %s141
      %p147 = scmp.eq.s32.totalorder %s15, 0
      %p148 = por %p146, %p147
      %p149 = scmp.ne.s32.totalorder %s138, %s141
      %p150 = scmp.eq.s32.totalorder %s20, 7
      %p151 = por %p149, %p150
      %p152 = scmp.ne.s32.totalorder %s141, %s142
      %p153 = scmp.eq.s32.totalorder %s20, 0
      %p154 = por %p152, %p153
      %p155 = scmp.ne.s32.totalorder %s141, %s142
      %p156 = scmp.eq.s32.totalorder %s21, 7
      %p157 = por %p155, %p156
      %p159 = scmp.ne.s32.totalorder %s142, %s158
      %p160 = scmp.eq.s32.totalorder %s21, 0
      %p161 = por %p159, %p160
      %s163 = sadd.s32 %s162, 1
      %p166 = scmp.eq.s32.totalorder %s15, 7
      %p167 = scmp.ne.s32.totalorder %s162, %s164
      %p168 = scmp.eq.s32.totalorder %s15, 0
      %p169 = por %p167, %p168
      %p170 = scmp.ne.s32.totalorder %s162, %s164
      %p171 = scmp.eq.s32.totalorder %s20, 7
      %p172 = por %p170, %p171
      %p173 = scmp.ne.s32.totalorder %s164, %s165
      %p174 = scmp.eq.s32.totalorder %s20, 0
      %p175 = por %p173, %p174
      %p176 = scmp.ne.s32.totalorder %s164, %s165
      %p177 = scmp.eq.s32.totalorder %s21, 7
      %p178 = por %p176, %p177
      %p180 = scmp.ne.s32.totalorder %s165, %s179
      %p181 = scmp.eq.s32.totalorder %s21, 0
      %p182 = por %p180, %p181
      %s183 = ssub.s32 %s22, %s34
      %p184 = scmp.eq.s32.totalorder %s183, 0
      %s186 = sadd.s32 %s185, 1
      %s187 = scalar_select %p184, %s185, %s186
      %p190 = pneg %p184
      %p191 = scmp.eq.s32.totalorder %s15, 7
      %p192 = por %p190, %p191
      %p193 = scmp.ne.s32.totalorder %s185, %s188
      %p194 = scmp.eq.s32.totalorder %s15, 0
      %p195 = por %p193, %p194
      %p196 = scmp.ne.s32.totalorder %s185, %s188
      %p197 = scmp.eq.s32.totalorder %s20, 7
      %p198 = por %p196, %p197
      %p199 = scmp.ne.s32.totalorder %s188, %s189
      %p200 = scmp.eq.s32.totalorder %s20, 0
      %p201 = por %p199, %p200
      %p202 = scmp.ne.s32.totalorder %s188, %s189
      %p203 = scmp.eq.s32.totalorder %s21, 7
      %p204 = por %p202, %p203
      %p206 = scmp.ne.s32.totalorder %s189, %s205
      %p207 = scmp.eq.s32.totalorder %s21, 0
      %p208 = por %p206, %p207
      %p209 = scmp.le.s32.totalorder 1, %s15
      %p210 = scmp.lt.s32.totalorder %s15, 9
      %p211 = pnand %p209, %p210
      %p212 = pneg %p211
      // Predicated region
      $region9: #{tpu_custom_call.1} parent=5 // pred_check
        _
      $region10: #{tpu_custom_call.1} parent=5 // pred_check_branch
        %214 = sbr.rel (%p211) target = $region12
      $region11: #{tpu_custom_call.1} parent=5 // pred_region
        %s215 = ssub.s32 %s15, 1
        // Predicated region
        $region13: #{tpu_custom_call.1} parent=11 // pred_check
          %p216 = pneg %p100
        $region14: #{tpu_custom_call.1} parent=11 // pred_check_branch
          %218 = sbr.rel (%p216) target = $region16
        $region15: #{tpu_custom_call.1} parent=11 // pred_region
          _
        $region16: #{tpu_custom_call.1} parent=11 // pred_fallthru
          _
        // Predicated region
        $region17: #{tpu_custom_call.1} parent=11 // pred_check
          %p219 = pneg %p175
        $region18: #{tpu_custom_call.1} parent=11 // pred_check_branch
          %221 = sbr.rel (%p219) target = $region20
        $region19: #{tpu_custom_call.1} parent=11 // pred_region
          _
        $region20: #{tpu_custom_call.1} parent=11 // pred_fallthru
          _
      $region12: #{tpu_custom_call.1} parent=5 // pred_fallthru
        _
      %p222 = scmp.lt.s32.totalorder %s15, 8
      // Predicated region
      $region21: #{tpu_custom_call.1} parent=5 // pred_check
        %p223 = pneg %p222
      $region22: #{tpu_custom_call.1} parent=5 // pred_check_branch
        %225 = sbr.rel (%p223) target = $region24
      $region23: #{tpu_custom_call.1} parent=5 // pred_region
        // Predicated region
        $region25: #{tpu_custom_call.1} parent=23 // pred_check
          %p226 = pneg %p47
        $region26: #{tpu_custom_call.1} parent=23 // pred_check_branch
          %228 = sbr.rel (%p226) target = $region28
        $region27: #{tpu_custom_call.1} parent=23 // pred_region
          %s229 = smul.u32 32, %s23
          %p230 = scmp.lt.s32.totalorder %s229, 63
          %s231 = scalar_select %p230, %s229, 63
          %s232 = smul.addr %s231, 4
          %s233 = scalar_lea.vmem %s0, %s232
          %s234 = smul.u32 32, %s23
        $region28: #{tpu_custom_call.1} parent=23 // pred_fallthru
          _
        // Predicated region
        $region29: #{tpu_custom_call.1} parent=23 // pred_check
          %p235 = pneg %p73
        $region30: #{tpu_custom_call.1} parent=23 // pred_check_branch
          %237 = sbr.rel (%p235) target = $region32
        $region31: #{tpu_custom_call.1} parent=23 // pred_region
          %s238 = smul.u32 16, %s22
          %p239 = scmp.lt.s32.totalorder %s238, 63
          %s240 = scalar_select %p239, %s238, 63
          %s241 = smul.addr %s240, 4
          %s242 = scalar_lea.vmem %s1, %s241
          %s243 = smul.u32 16, %s22
        $region32: #{tpu_custom_call.1} parent=23 // pred_fallthru
          _
        // Predicated region
        $region33: #{tpu_custom_call.1} parent=23 // pred_check
          %p244 = pneg %p122
        $region34: #{tpu_custom_call.1} parent=23 // pred_check_branch
          %246 = sbr.rel (%p244) target = $region36
        $region35: #{tpu_custom_call.1} parent=23 // pred_region
          %s247 = sand.u32 %s112, 1
          %s248 = sand.u32 %s112, 1
          %s249 = smul.addr %s248, 128
          %s250 = scalar_lea.vmem [#allocation3], %s249
          %s251 = smul.u32 16, %s22
          %s252 = smul.u32 2, %s23
          %s253 = smul.addr %s251, 4
          %s254 = sadd.s32 %s252, %s253
          %s255 = smul.addr %s254, 4
          %s256 = scalar_lea.vmem %s3, %s255
          // Predicated region
          $region37: #{tpu_custom_call.1} parent=35 // pred_check
            _
          $region38: #{tpu_custom_call.1} parent=35 // pred_check_branch
            %258 = sbr.rel (0) target = $region40
          $region39: #{tpu_custom_call.1} parent=35 // pred_region
            // Predicated region
            $region41: #{tpu_custom_call.1} parent=39 // pred_check
              _
            $region42: #{tpu_custom_call.1} parent=39 // pred_check_branch
              %260 = sbr.rel (0) target = $region44
            $region43: #{tpu_custom_call.1} parent=39 // pred_region
              // Predicated region
              $region56: #{tpu_custom_call.1} parent=43 // pred_check
                _
              $region57: #{tpu_custom_call.1} parent=43 // pred_check_branch
                %306 = sbr.rel (0) target = $region59
              $region58: #{tpu_custom_call.1} parent=43 // pred_region
                loop: start=0, step=1, limit=1
                $region60: #{tpu_custom_call.1} parent=58 // loop_pre_header
                  _
                $region61: #{tpu_custom_call.1} parent=58 // loop_header
                  %s308 = sphi 0, %s312
                  %p309 = scmp.ge.s32.totalorder %s308, 1
                  %s313 = sphi %s256, %s256
                  %s314 = sphi %s250, %s250
                $region62: #{tpu_custom_call.1} parent=58 // loop_header_branch
                  %311 = sbr.rel (%p309) target = $region66
                $region63: #{tpu_custom_call.1} parent=58 // loop_body
                  %v315 = vld [vmem:[%s313] sm:$0xff]
                  %316 = vst [vmem:[%s314] sm:$0xff] %v315
                  %v317 = vld [vmem:[%s313 + $0x10] sm:$0xff]
                  %318 = vst [vmem:[%s314 + $0x8] sm:$0xff] %v317
                  %v319 = vld [vmem:[%s313 + $0x20] sm:$0xff]
                  %320 = vst [vmem:[%s314 + $0x10] sm:$0xff] %v319
                  %v321 = vld [vmem:[%s313 + $0x30] sm:$0xff]
                  %322 = vst [vmem:[%s314 + $0x18] sm:$0xff] %v321
                  %v323 = vld [vmem:[%s313 + $0x40] sm:$0xff]
                  %324 = vst [vmem:[%s314 + $0x20] sm:$0xff] %v323
                  %v325 = vld [vmem:[%s313 + $0x50] sm:$0xff]
                  %326 = vst [vmem:[%s314 + $0x28] sm:$0xff] %v325
                  %v327 = vld [vmem:[%s313 + $0x60] sm:$0xff]
                  %328 = vst [vmem:[%s314 + $0x30] sm:$0xff] %v327
                  %v329 = vld [vmem:[%s313 + $0x70] sm:$0xff]
                  %330 = vst [vmem:[%s314 + $0x38] sm:$0xff] %v329
                  %v331 = vld [vmem:[%s313 + $0x80] sm:$0xff]
                  %332 = vst [vmem:[%s314 + $0x40] sm:$0xff] %v331
                  %v333 = vld [vmem:[%s313 + $0x90] sm:$0xff]
                  %334 = vst [vmem:[%s314 + $0x48] sm:$0xff] %v333
                  %v335 = vld [vmem:[%s313 + $0xa0] sm:$0xff]
                  %336 = vst [vmem:[%s314 + $0x50] sm:$0xff] %v335
                  %v337 = vld [vmem:[%s313 + $0xb0] sm:$0xff]
                  %338 = vst [vmem:[%s314 + $0x58] sm:$0xff] %v337
                  %v339 = vld [vmem:[%s313 + $0xc0] sm:$0xff]
                  %340 = vst [vmem:[%s314 + $0x60] sm:$0xff] %v339
                  %v341 = vld [vmem:[%s313 + $0xd0] sm:$0xff]
                  %342 = vst [vmem:[%s314 + $0x68] sm:$0xff] %v341
                  %v343 = vld [vmem:[%s313 + $0xe0] sm:$0xff]
                  %344 = vst [vmem:[%s314 + $0x70] sm:$0xff] %v343
                  %v345 = vld [vmem:[%s313 + $0xf0] sm:$0xff]
                  %346 = vst [vmem:[%s314 + $0x78] sm:$0xff] %v345
                $region64: #{tpu_custom_call.1} parent=58 // loop_footer
                  %s312 = sadd.s32 1, %s308
                $region65: #{tpu_custom_call.1} parent=58 // loop_footer_branch
                  %307 = sbr.rel target = $region61
                $region66: #{tpu_custom_call.1} parent=58 // loop_exit
                  _
              $region59: #{tpu_custom_call.1} parent=43 // pred_fallthru
                _
              // Predicated region
              $region67: #{tpu_custom_call.1} parent=43 // pred_check
                _
              $region68: #{tpu_custom_call.1} parent=43 // pred_check_branch
                %348 = sbr.rel target = $region70
              $region69: #{tpu_custom_call.1} parent=43 // pred_region
                _
              $region70: #{tpu_custom_call.1} parent=43 // pred_fallthru
                _
            $region44: #{tpu_custom_call.1} parent=39 // pred_fallthru
              _
            // Predicated region
            $region45: #{tpu_custom_call.1} parent=39 // pred_check
              _
            $region46: #{tpu_custom_call.1} parent=39 // pred_check_branch
              %262 = sbr.rel target = $region48
            $region47: #{tpu_custom_call.1} parent=39 // pred_region
              %s264 = ssub.s32 256, 1
              loop: start=0, step=1, limit=1
              $region49: #{tpu_custom_call.1} parent=47 // loop_pre_header
                _
              $region50: #{tpu_custom_call.1} parent=47 // loop_header
                %s266 = sphi 0, %s270
                %p267 = scmp.ge.s32.totalorder %s266, 1
                %s271 = sphi %s256, %s256
                %s272 = sphi %s250, %s250
              $region51: #{tpu_custom_call.1} parent=47 // loop_header_branch
                %269 = sbr.rel (%p267) target = $region55
              $region52: #{tpu_custom_call.1} parent=47 // loop_body
                %v273 = vld [vmem:[%s271] sm:%s264]
                %274 = vst [vmem:[%s272] sm:%s264] %v273
                %v275 = vld [vmem:[%s271 + $0x10] sm:%s264]
                %276 = vst [vmem:[%s272 + $0x8] sm:%s264] %v275
                %v277 = vld [vmem:[%s271 + $0x20] sm:%s264]
                %278 = vst [vmem:[%s272 + $0x10] sm:%s264] %v277
                %v279 = vld [vmem:[%s271 + $0x30] sm:%s264]
                %280 = vst [vmem:[%s272 + $0x18] sm:%s264] %v279
                %v281 = vld [vmem:[%s271 + $0x40] sm:%s264]
                %282 = vst [vmem:[%s272 + $0x20] sm:%s264] %v281
                %v283 = vld [vmem:[%s271 + $0x50] sm:%s264]
                %284 = vst [vmem:[%s272 + $0x28] sm:%s264] %v283
                %v285 = vld [vmem:[%s271 + $0x60] sm:%s264]
                %286 = vst [vmem:[%s272 + $0x30] sm:%s264] %v285
                %v287 = vld [vmem:[%s271 + $0x70] sm:%s264]
                %288 = vst [vmem:[%s272 + $0x38] sm:%s264] %v287
                %v289 = vld [vmem:[%s271 + $0x80] sm:%s264]
                %290 = vst [vmem:[%s272 + $0x40] sm:%s264] %v289
                %v291 = vld [vmem:[%s271 + $0x90] sm:%s264]
                %292 = vst [vmem:[%s272 + $0x48] sm:%s264] %v291
                %v293 = vld [vmem:[%s271 + $0xa0] sm:%s264]
                %294 = vst [vmem:[%s272 + $0x50] sm:%s264] %v293
                %v295 = vld [vmem:[%s271 + $0xb0] sm:%s264]
                %296 = vst [vmem:[%s272 + $0x58] sm:%s264] %v295
                %v297 = vld [vmem:[%s271 + $0xc0] sm:%s264]
                %298 = vst [vmem:[%s272 + $0x60] sm:%s264] %v297
                %v299 = vld [vmem:[%s271 + $0xd0] sm:%s264]
                %300 = vst [vmem:[%s272 + $0x68] sm:%s264] %v299
                %v301 = vld [vmem:[%s271 + $0xe0] sm:%s264]
                %302 = vst [vmem:[%s272 + $0x70] sm:%s264] %v301
                %v303 = vld [vmem:[%s271 + $0xf0] sm:%s264]
                %304 = vst [vmem:[%s272 + $0x78] sm:%s264] %v303
              $region53: #{tpu_custom_call.1} parent=47 // loop_footer
                %s270 = sadd.s32 1, %s266
              $region54: #{tpu_custom_call.1} parent=47 // loop_footer_branch
                %265 = sbr.rel target = $region50
              $region55: #{tpu_custom_call.1} parent=47 // loop_exit
                _
            $region48: #{tpu_custom_call.1} parent=39 // pred_fallthru
              _
          $region40: #{tpu_custom_call.1} parent=35 // pred_fallthru
            _
          %349 = vnop
        $region36: #{tpu_custom_call.1} parent=23 // pred_fallthru
          _
        // Predicated region
        $region71: #{tpu_custom_call.1} parent=23 // pred_check
          %p350 = pneg %p148
        $region72: #{tpu_custom_call.1} parent=23 // pred_check_branch
          %352 = sbr.rel (%p350) target = $region74
        $region73: #{tpu_custom_call.1} parent=23 // pred_region
          %s353 = smul.u32 16, %s22
          %p354 = scmp.lt.s32.totalorder %s353, 63
          %s355 = scalar_select %p354, %s353, 63
          %s356 = smul.addr %s355, 8
          %s357 = scalar_lea.vmem %s4, %s356
          %s358 = smul.u32 16, %s22
        $region74: #{tpu_custom_call.1} parent=23 // pred_fallthru
          _
      $region24: #{tpu_custom_call.1} parent=5 // pred_fallthru
        _
      %p359 = scmp.le.s32.totalorder 1, %s15
      %p360 = scmp.lt.s32.totalorder %s15, 9
      %p361 = pnand %p359, %p360
      %p362 = pneg %p361
      // Predicated region
      $region75: #{tpu_custom_call.1} parent=5 // pred_check
        _
      $region76: #{tpu_custom_call.1} parent=5 // pred_check_branch
        %364 = sbr.rel (%p361) target = $region78
      $region77: #{tpu_custom_call.1} parent=5 // pred_region
        %s365 = ssub.s32 %s15, 1
        %s366 = sand.u32 %s115, 1
        %s367 = sand.u32 %s115, 1
        %s368 = smul.addr %s367, 128
        %s369 = scalar_lea.vmem [#allocation3], %s368
        // Predicated region
        $region79: #{tpu_custom_call.1} parent=77 // pred_check
          %p370 = pneg %p128
        $region80: #{tpu_custom_call.1} parent=77 // pred_check_branch
          %372 = sbr.rel (%p370) target = $region82
        $region81: #{tpu_custom_call.1} parent=77 // pred_region
          _
        $region82: #{tpu_custom_call.1} parent=77 // pred_fallthru
          _
        %s373 = smul.u32 32, %s25
        %p374 = scmp.lt.s32.totalorder %s373, 63
        %s375 = scalar_select %p374, %s373, 63
        %s376 = smul.addr %s375, 4
        %s377 = scalar_lea.vmem %s0, %s376
        %p378 = pneg %p53
        %p379 = pneg %p50
        %s380 = smul.u32 16, %s24
        %p381 = scmp.lt.s32.totalorder %s380, 63
        %s382 = scalar_select %p381, %s380, 63
        %s383 = smul.addr %s382, 4
        %s384 = scalar_lea.vmem %s1, %s383
        %p385 = pneg %p79
        %p386 = pneg %p76
        %p387 = pneg %p100
        %p388 = pneg %p97
        %s389 = sand.u32 %s115, 1
        %s390 = sand.u32 %s115, 1
        %s391 = smul.addr %s390, 128
        %s392 = scalar_lea.vmem [#allocation3], %s391
        %p393 = pneg %p128
        %p394 = pneg %p125
        %s395 = smul.u32 16, %s24
        %p396 = scmp.lt.s32.totalorder %s395, 63
        %s397 = scalar_select %p396, %s395, 63
        %s398 = smul.addr %s397, 8
        %s399 = scalar_lea.vmem %s4, %s398
        %p400 = pneg %p154
        %p401 = pneg %p151
        %p402 = pneg %p175
        %p403 = pneg %p172
        %p404 = pneg %p201
        %p405 = pneg %p198
        %s406 = sand.u32 %s188, 1
        %s407 = scalar_lea.sflag [#allocation5], %s406
        %s408 = sand.u32 %s188, 1
        %s409 = smul.addr %s408, 128
        %s410 = scalar_lea.vmem [#allocation4], %s409
        %s411 = smul.u32 32, %s25
        %p412 = scmp.lt.s32.totalorder %s411, 63
        %s413 = scalar_select %p412, %s411, 63
        %s414 = smul.addr %s413, 4
        %s415 = scalar_lea.vmem %s0, %s414
        %s416 = smul.u32 32, %s25
        %s417 = smul.u32 16, %s24
        %p418 = scmp.lt.s32.totalorder %s417, 63
        %s419 = scalar_select %p418, %s417, 63
        %s420 = smul.addr %s419, 4
        %s421 = scalar_lea.vmem %s1, %s420
        %s422 = smul.u32 16, %s24
        %s423 = smul.u32 16, %s24
        %s424 = smul.u32 2, %s25
        %s425 = smul.u32 16, %s24
        %p426 = scmp.lt.s32.totalorder %s425, 63
        %s427 = scalar_select %p426, %s425, 63
        %s428 = smul.addr %s427, 8
        %s429 = scalar_lea.vmem %s4, %s428
        %s430 = smul.u32 16, %s24
        %s431 = smul.u32 16, %s24
        %p433 = scmp.eq.s32.totalorder %s25, 0
        // Predicated region
        $region83: #{tpu_custom_call.1} parent=77 // pred_check
          %p434 = pneg %p433
        $region84: #{tpu_custom_call.1} parent=77 // pred_check_branch
          %436 = sbr.rel (%p434) target = $region86
        $region85: #{tpu_custom_call.1} parent=77 // pred_region
          %437 = vst [vmem:[#allocation2] sm:$0xff] 0.0
          %438 = vst [vmem:[#allocation2 + $0x8] sm:$0xff] 0.0
          %439 = vst [vmem:[#allocation2 + $0x10] sm:$0xff] 0.0
          %440 = vst [vmem:[#allocation2 + $0x18] sm:$0xff] 0.0
          %441 = vst [vmem:[#allocation2 + $0x20] sm:$0xff] 0.0
          %442 = vst [vmem:[#allocation2 + $0x28] sm:$0xff] 0.0
          %443 = vst [vmem:[#allocation2 + $0x30] sm:$0xff] 0.0
          %444 = vst [vmem:[#allocation2 + $0x38] sm:$0xff] 0.0
          %445 = vst [vmem:[#allocation2 + $0x40] sm:$0xff] 0.0
          %446 = vst [vmem:[#allocation2 + $0x48] sm:$0xff] 0.0
          %447 = vst [vmem:[#allocation2 + $0x50] sm:$0xff] 0.0
          %448 = vst [vmem:[#allocation2 + $0x58] sm:$0xff] 0.0
          %449 = vst [vmem:[#allocation2 + $0x60] sm:$0xff] 0.0
          %450 = vst [vmem:[#allocation2 + $0x68] sm:$0xff] 0.0
          %451 = vst [vmem:[#allocation2 + $0x70] sm:$0xff] 0.0
          %452 = vst [vmem:[#allocation2 + $0x78] sm:$0xff] 0.0
        $region86: #{tpu_custom_call.1} parent=77 // pred_fallthru
          _
        %v453 = vld [vmem:[%s415] sm:$0xf]
        %v454 = vld [vmem:[%s415 + $0x4] sm:$0xf]
        %v455 = vld [vmem:[%s415 + $0x8] sm:$0xf]
        %v456 = vld [vmem:[%s415 + $0xc] sm:$0xf]
        %v457 = vld [vmem:[%s415 + $0x10] sm:$0xf]
        %v458 = vld [vmem:[%s415 + $0x14] sm:$0xf]
        %v459 = vld [vmem:[%s415 + $0x18] sm:$0xf]
        %v460 = vld [vmem:[%s415 + $0x1c] sm:$0xf]
        %v461 = vld [vmem:[%s415 + $0x20] sm:$0xf]
        %v462 = vld [vmem:[%s415 + $0x24] sm:$0xf]
        %v463 = vld [vmem:[%s415 + $0x28] sm:$0xf]
        %v464 = vld [vmem:[%s415 + $0x2c] sm:$0xf]
        %v465 = vld [vmem:[%s415 + $0x30] sm:$0xf]
        %v466 = vld [vmem:[%s415 + $0x34] sm:$0xf]
        %v467 = vld [vmem:[%s415 + $0x38] sm:$0xf]
        %v468 = vld [vmem:[%s415 + $0x3c] sm:$0xf]
        %v469 = vld [vmem:[%s415 + $0x40] sm:$0xf]
        %v470 = vld [vmem:[%s415 + $0x44] sm:$0xf]
        %v471 = vld [vmem:[%s415 + $0x48] sm:$0xf]
        %v472 = vld [vmem:[%s415 + $0x4c] sm:$0xf]
        %v473 = vld [vmem:[%s415 + $0x50] sm:$0xf]
        %v474 = vld [vmem:[%s415 + $0x54] sm:$0xf]
        %v475 = vld [vmem:[%s415 + $0x58] sm:$0xf]
        %v476 = vld [vmem:[%s415 + $0x5c] sm:$0xf]
        %v477 = vld [vmem:[%s415 + $0x60] sm:$0xf]
        %v478 = vld [vmem:[%s415 + $0x64] sm:$0xf]
        %v479 = vld [vmem:[%s415 + $0x68] sm:$0xf]
        %v480 = vld [vmem:[%s415 + $0x6c] sm:$0xf]
        %v481 = vld [vmem:[%s415 + $0x70] sm:$0xf]
        %v482 = vld [vmem:[%s415 + $0x74] sm:$0xf]
        %v483 = vld [vmem:[%s415 + $0x78] sm:$0xf]
        %v484 = vld [vmem:[%s415 + $0x7c] sm:$0xf]
        %v485 = vld [vmem:[%s2] sm:$0xf]
        %v486 = vld [vmem:[%s2 + $0x4] sm:$0xf]
        %v487 = vld [vmem:[%s2 + $0x8] sm:$0xf]
        %v488 = vld [vmem:[%s2 + $0xc] sm:$0xf]
        %v521 = vunpack.c.l.b16 %v453
        %v522 = vunpack.c.l.b16 %v454
        %v523 = vunpack.c.l.b16 %v455
        %v524 = vunpack.c.l.b16 %v456
        %v525 = vunpack.c.l.b16 %v457
        %v526 = vunpack.c.l.b16 %v458
        %v527 = vunpack.c.l.b16 %v459
        %v528 = vunpack.c.l.b16 %v460
        %v529 = vunpack.c.l.b16 %v461
        %v530 = vunpack.c.l.b16 %v462
        %v531 = vunpack.c.l.b16 %v463
        %v532 = vunpack.c.l.b16 %v464
        %v533 = vunpack.c.l.b16 %v465
        %v534 = vunpack.c.l.b16 %v466
        %v535 = vunpack.c.l.b16 %v467
        %v536 = vunpack.c.l.b16 %v468
        %v537 = vunpack.c.l.b16 %v469
        %v538 = vunpack.c.l.b16 %v470
        %v539 = vunpack.c.l.b16 %v471
        %v540 = vunpack.c.l.b16 %v472
        %v541 = vunpack.c.l.b16 %v473
        %v542 = vunpack.c.l.b16 %v474
        %v543 = vunpack.c.l.b16 %v475
        %v544 = vunpack.c.l.b16 %v476
        %v545 = vunpack.c.l.b16 %v477
        %v546 = vunpack.c.l.b16 %v478
        %v547 = vunpack.c.l.b16 %v479
        %v548 = vunpack.c.l.b16 %v480
        %v549 = vunpack.c.l.b16 %v481
        %v550 = vunpack.c.l.b16 %v482
        %v551 = vunpack.c.l.b16 %v483
        %v552 = vunpack.c.l.b16 %v484
        %v553 = vpack.c.b16 %v522, %v521
        %v554 = vpack.c.b16 %v524, %v523
        %v555 = vpack.c.b16 %v526, %v525
        %v556 = vpack.c.b16 %v528, %v527
        %v557 = vpack.c.b16 %v530, %v529
        %v558 = vpack.c.b16 %v532, %v531
        %v559 = vpack.c.b16 %v534, %v533
        %v560 = vpack.c.b16 %v536, %v535
        %v561 = vpack.c.b16 %v538, %v537
        %v562 = vpack.c.b16 %v540, %v539
        %v563 = vpack.c.b16 %v542, %v541
        %v564 = vpack.c.b16 %v544, %v543
        %v565 = vpack.c.b16 %v546, %v545
        %v566 = vpack.c.b16 %v548, %v547
        %v567 = vpack.c.b16 %v550, %v549
        %v568 = vpack.c.b16 %v552, %v551
        %v573 = vunpack.c.l.b16 %v485
        %v574 = vunpack.c.l.b16 %v486
        %v575 = vunpack.c.l.b16 %v487
        %v576 = vunpack.c.l.b16 %v488
        %v577 = vpack.c.b16 %v574, %v573
        %v578 = vpack.c.b16 %v576, %v575
        %vm581 = vcmask 261120
        %v583 = vsel %vm581, %v553, 0
        %v586 = vsel %vm581, %v554, 0
        %v589 = vsel %vm581, %v555, 0
        %v592 = vsel %vm581, %v556, 0
        %v595 = vsel %vm581, %v557, 0
        %v598 = vsel %vm581, %v558, 0
        %v601 = vsel %vm581, %v559, 0
        %v604 = vsel %vm581, %v560, 0
        %v607 = vsel %vm581, %v561, 0
        %v610 = vsel %vm581, %v562, 0
        %v613 = vsel %vm581, %v563, 0
        %v616 = vsel %vm581, %v564, 0
        %v619 = vsel %vm581, %v565, 0
        %v622 = vsel %vm581, %v566, 0
        %v625 = vsel %vm581, %v567, 0
        %v628 = vsel %vm581, %v568, 0
        %630 = vmatprep.subr.bf16.mxu0 0
        %631 = vmatpush1.bf16.msra.mxu0 0
        %632 = vmatprep.subr.bf16.mxu0 0
        %633 = vmatpush1.bf16.msra.mxu0 0
        %634 = vmatprep.subr.bf16.mxu0 0
        %635 = vmatpush1.bf16.msra.mxu0 0
        %636 = vmatprep.subr.bf16.mxu0 0
        %637 = vmatpush1.bf16.msra.mxu0 0
        %638 = vmatprep.subr.bf16.mxu0 0
        %639 = vmatpush1.bf16.msra.mxu0 0
        %640 = vmatprep.subr.bf16.mxu0 0
        %641 = vmatpush1.bf16.msra.mxu0 0
        %642 = vmatprep.subr.bf16.mxu0 0
        %643 = vmatpush1.bf16.msra.mxu0 %v578
        %644 = vmatprep.subr.bf16.mxu0 0
        %645 = vmatpush1.bf16.msra.mxu0 %v577
        %646 = vmatprep.subr.bf16.mxu0 0
        %647 = vmatpush2.bf16.msra.mxu0 0
        %648 = vmatprep.subr.bf16.mxu0 0
        %649 = vmatpush2.bf16.msra.mxu0 0
        %650 = vmatprep.subr.bf16.mxu0 0
        %651 = vmatpush2.bf16.msra.mxu0 0
        %652 = vmatprep.subr.bf16.mxu0 0
        %653 = vmatpush2.bf16.msra.mxu0 0
        %654 = vmatprep.subr.bf16.mxu0 0
        %655 = vmatpush2.bf16.msra.mxu0 0
        %656 = vmatprep.subr.bf16.mxu0 0
        %657 = vmatpush2.bf16.msra.mxu0 0
        %658 = vmatprep.subr.bf16.mxu0 0
        %659 = vmatpush2.bf16.msra.mxu0 0
        %660 = vmatprep.subr.bf16.mxu0 0
        %661 = vmatpush2.bf16.msra.mxu0 0
        %662 = vmatprep.mubr.bf16.mxu0 0
        %663 = vmatmul.mubr.bf16.gmra.mxu0 %v583
        %v664 = vpop.f32.mrf.mxu0
        %v665 = vadd.f32 0.0, %v664
        %v666 = vpop.f32.mrf.mxu0
        %v667 = vpop.f32.mrf.mxu0
        %v668 = vadd.f32 0.0, %v667
        %v669 = vpop.f32.mrf.mxu0
        %670 = vmatprep.mubr.bf16.mxu0 0
        %671 = vmatmul.mubr.bf16.gmra.mxu0 %v586
        %v672 = vpop.f32.mrf.mxu0
        %v673 = vadd.f32 0.0, %v672
        %v674 = vpop.f32.mrf.mxu0
        %v675 = vpop.f32.mrf.mxu0
        %v676 = vadd.f32 0.0, %v675
        %v677 = vpop.f32.mrf.mxu0
        %678 = vmatprep.mubr.bf16.mxu0 0
        %679 = vmatmul.mubr.bf16.gmra.mxu0 %v589
        %v680 = vpop.f32.mrf.mxu0
        %v681 = vadd.f32 0.0, %v680
        %v682 = vpop.f32.mrf.mxu0
        %v683 = vpop.f32.mrf.mxu0
        %v684 = vadd.f32 0.0, %v683
        %v685 = vpop.f32.mrf.mxu0
        %686 = vmatprep.mubr.bf16.mxu0 0
        %687 = vmatmul.mubr.bf16.gmra.mxu0 %v592
        %v688 = vpop.f32.mrf.mxu0
        %v689 = vadd.f32 0.0, %v688
        %v690 = vpop.f32.mrf.mxu0
        %v691 = vpop.f32.mrf.mxu0
        %v692 = vadd.f32 0.0, %v691
        %v693 = vpop.f32.mrf.mxu0
        %694 = vmatprep.mubr.bf16.mxu0 0
        %695 = vmatmul.mubr.bf16.gmra.mxu0 %v595
        %v696 = vpop.f32.mrf.mxu0
        %v697 = vadd.f32 0.0, %v696
        %v698 = vpop.f32.mrf.mxu0
        %v699 = vpop.f32.mrf.mxu0
        %v700 = vadd.f32 0.0, %v699
        %v701 = vpop.f32.mrf.mxu0
        %702 = vmatprep.mubr.bf16.mxu0 0
        %703 = vmatmul.mubr.bf16.gmra.mxu0 %v598
        %v704 = vpop.f32.mrf.mxu0
        %v705 = vadd.f32 0.0, %v704
        %v706 = vpop.f32.mrf.mxu0
        %v707 = vpop.f32.mrf.mxu0
        %v708 = vadd.f32 0.0, %v707
        %v709 = vpop.f32.mrf.mxu0
        %710 = vmatprep.mubr.bf16.mxu0 0
        %711 = vmatmul.mubr.bf16.gmra.mxu0 %v601
        %v712 = vpop.f32.mrf.mxu0
        %v713 = vadd.f32 0.0, %v712
        %v714 = vpop.f32.mrf.mxu0
        %v715 = vpop.f32.mrf.mxu0
        %v716 = vadd.f32 0.0, %v715
        %v717 = vpop.f32.mrf.mxu0
        %718 = vmatprep.mubr.bf16.mxu0 0
        %719 = vmatmul.mubr.bf16.gmra.mxu0 %v604
        %v720 = vpop.f32.mrf.mxu0
        %v721 = vadd.f32 0.0, %v720
        %v722 = vpop.f32.mrf.mxu0
        %v723 = vpop.f32.mrf.mxu0
        %v724 = vadd.f32 0.0, %v723
        %v725 = vpop.f32.mrf.mxu0
        %726 = vmatprep.mubr.bf16.mxu0 0
        %727 = vmatmul.mubr.bf16.gmra.mxu0 %v607
        %v728 = vpop.f32.mrf.mxu0
        %v729 = vadd.f32 0.0, %v728
        %v730 = vpop.f32.mrf.mxu0
        %v731 = vpop.f32.mrf.mxu0
        %v732 = vadd.f32 0.0, %v731
        %v733 = vpop.f32.mrf.mxu0
        %734 = vmatprep.mubr.bf16.mxu0 0
        %735 = vmatmul.mubr.bf16.gmra.mxu0 %v610
        %v736 = vpop.f32.mrf.mxu0
        %v737 = vadd.f32 0.0, %v736
        %v738 = vpop.f32.mrf.mxu0
        %v739 = vpop.f32.mrf.mxu0
        %v740 = vadd.f32 0.0, %v739
        %v741 = vpop.f32.mrf.mxu0
        %742 = vmatprep.mubr.bf16.mxu0 0
        %743 = vmatmul.mubr.bf16.gmra.mxu0 %v613
        %v744 = vpop.f32.mrf.mxu0
        %v745 = vadd.f32 0.0, %v744
        %v746 = vpop.f32.mrf.mxu0
        %v747 = vpop.f32.mrf.mxu0
        %v748 = vadd.f32 0.0, %v747
        %v749 = vpop.f32.mrf.mxu0
        %750 = vmatprep.mubr.bf16.mxu0 0
        %751 = vmatmul.mubr.bf16.gmra.mxu0 %v616
        %v752 = vpop.f32.mrf.mxu0
        %v753 = vadd.f32 0.0, %v752
        %v754 = vpop.f32.mrf.mxu0
        %v755 = vpop.f32.mrf.mxu0
        %v756 = vadd.f32 0.0, %v755
        %v757 = vpop.f32.mrf.mxu0
        %758 = vmatprep.mubr.bf16.mxu0 0
        %759 = vmatmul.mubr.bf16.gmra.mxu0 %v619
        %v760 = vpop.f32.mrf.mxu0
        %v761 = vadd.f32 0.0, %v760
        %v762 = vpop.f32.mrf.mxu0
        %v763 = vpop.f32.mrf.mxu0
        %v764 = vadd.f32 0.0, %v763
        %v765 = vpop.f32.mrf.mxu0
        %766 = vmatprep.mubr.bf16.mxu0 0
        %767 = vmatmul.mubr.bf16.gmra.mxu0 %v622
        %v768 = vpop.f32.mrf.mxu0
        %v769 = vadd.f32 0.0, %v768
        %v770 = vpop.f32.mrf.mxu0
        %v771 = vpop.f32.mrf.mxu0
        %v772 = vadd.f32 0.0, %v771
        %v773 = vpop.f32.mrf.mxu0
        %774 = vmatprep.mubr.bf16.mxu0 0
        %775 = vmatmul.mubr.bf16.gmra.mxu0 %v625
        %v776 = vpop.f32.mrf.mxu0
        %v777 = vadd.f32 0.0, %v776
        %v778 = vpop.f32.mrf.mxu0
        %v779 = vpop.f32.mrf.mxu0
        %v780 = vadd.f32 0.0, %v779
        %v781 = vpop.f32.mrf.mxu0
        %782 = vmatprep.mubr.bf16.mxu0 0
        %783 = vmatmul.mubr.bf16.gmra.mxu0 %v628
        %v784 = vpop.f32.mrf.mxu0
        %v785 = vadd.f32 0.0, %v784
        %v786 = vpop.f32.mrf.mxu0
        %v787 = vpop.f32.mrf.mxu0
        %v788 = vadd.f32 0.0, %v787
        %v789 = vpop.f32.mrf.mxu0
        %790 = vdwg.mxu0
        %v791 = vpack.c.bf16 %v668, %v665
        %v792 = vpack.c.bf16 %v676, %v673
        %v793 = vpack.c.bf16 %v684, %v681
        %v794 = vpack.c.bf16 %v692, %v689
        %v795 = vpack.c.bf16 %v700, %v697
        %v796 = vpack.c.bf16 %v708, %v705
        %v797 = vpack.c.bf16 %v716, %v713
        %v798 = vpack.c.bf16 %v724, %v721
        %v799 = vpack.c.bf16 %v732, %v729
        %v800 = vpack.c.bf16 %v740, %v737
        %v801 = vpack.c.bf16 %v748, %v745
        %v802 = vpack.c.bf16 %v756, %v753
        %v803 = vpack.c.bf16 %v764, %v761
        %v804 = vpack.c.bf16 %v772, %v769
        %v805 = vpack.c.bf16 %v780, %v777
        %v806 = vpack.c.bf16 %v788, %v785
        %v807 = vld [vmem:[%s369] sm:$0xff]
        %v808 = vld [vmem:[%s369 + $0x8] sm:$0xff]
        %v809 = vld [vmem:[%s369 + $0x10] sm:$0xff]
        %v810 = vld [vmem:[%s369 + $0x18] sm:$0xff]
        %v811 = vld [vmem:[%s369 + $0x20] sm:$0xff]
        %v812 = vld [vmem:[%s369 + $0x28] sm:$0xff]
        %v813 = vld [vmem:[%s369 + $0x30] sm:$0xff]
        %v814 = vld [vmem:[%s369 + $0x38] sm:$0xff]
        %v815 = vld [vmem:[%s369 + $0x40] sm:$0xff]
        %v816 = vld [vmem:[%s369 + $0x48] sm:$0xff]
        %v817 = vld [vmem:[%s369 + $0x50] sm:$0xff]
        %v818 = vld [vmem:[%s369 + $0x58] sm:$0xff]
        %v819 = vld [vmem:[%s369 + $0x60] sm:$0xff]
        %v820 = vld [vmem:[%s369 + $0x68] sm:$0xff]
        %v821 = vld [vmem:[%s369 + $0x70] sm:$0xff]
        %v822 = vld [vmem:[%s369 + $0x78] sm:$0xff]
        %v823 = vld [vmem:[#allocation2] sm:$0xff]
        %v824 = vld [vmem:[#allocation2 + $0x8] sm:$0xff]
        %v825 = vld [vmem:[#allocation2 + $0x10] sm:$0xff]
        %v826 = vld [vmem:[#allocation2 + $0x18] sm:$0xff]
        %v827 = vld [vmem:[#allocation2 + $0x20] sm:$0xff]
        %v828 = vld [vmem:[#allocation2 + $0x28] sm:$0xff]
        %v829 = vld [vmem:[#allocation2 + $0x30] sm:$0xff]
        %v830 = vld [vmem:[#allocation2 + $0x38] sm:$0xff]
        %v831 = vld [vmem:[#allocation2 + $0x40] sm:$0xff]
        %v832 = vld [vmem:[#allocation2 + $0x48] sm:$0xff]
        %v833 = vld [vmem:[#allocation2 + $0x50] sm:$0xff]
        %v834 = vld [vmem:[#allocation2 + $0x58] sm:$0xff]
        %v835 = vld [vmem:[#allocation2 + $0x60] sm:$0xff]
        %v836 = vld [vmem:[#allocation2 + $0x68] sm:$0xff]
        %v837 = vld [vmem:[#allocation2 + $0x70] sm:$0xff]
        %v838 = vld [vmem:[#allocation2 + $0x78] sm:$0xff]
        %v855 = vunpack.c.l.b16 %v807
        %v856 = vunpack.c.h.b16 %v807
        %v857 = vunpack.c.l.b16 %v808
        %v858 = vunpack.c.h.b16 %v808
        %v859 = vunpack.c.l.b16 %v809
        %v860 = vunpack.c.h.b16 %v809
        %v861 = vunpack.c.l.b16 %v810
        %v862 = vunpack.c.h.b16 %v810
        %v863 = vunpack.c.l.b16 %v811
        %v864 = vunpack.c.h.b16 %v811
        %v865 = vunpack.c.l.b16 %v812
        %v866 = vunpack.c.h.b16 %v812
        %v867 = vunpack.c.l.b16 %v813
        %v868 = vunpack.c.h.b16 %v813
        %v869 = vunpack.c.l.b16 %v814
        %v870 = vunpack.c.h.b16 %v814
        %v871 = vunpack.c.l.b16 %v815
        %v872 = vunpack.c.h.b16 %v815
        %v873 = vunpack.c.l.b16 %v816
        %v874 = vunpack.c.h.b16 %v816
        %v875 = vunpack.c.l.b16 %v817
        %v876 = vunpack.c.h.b16 %v817
        %v877 = vunpack.c.l.b16 %v818
        %v878 = vunpack.c.h.b16 %v818
        %v879 = vunpack.c.l.b16 %v819
        %v880 = vunpack.c.h.b16 %v819
        %v881 = vunpack.c.l.b16 %v820
        %v882 = vunpack.c.h.b16 %v820
        %v883 = vunpack.c.l.b16 %v821
        %v884 = vunpack.c.h.b16 %v821
        %v885 = vunpack.c.l.b16 %v822
        %v886 = vunpack.c.h.b16 %v822
        %v887 = vpack.c.b16 %v857, %v855
        %v888 = vpack.c.b16 %v858, %v856
        %v889 = vpack.c.b16 %v861, %v859
        %v890 = vpack.c.b16 %v862, %v860
        %v891 = vpack.c.b16 %v865, %v863
        %v892 = vpack.c.b16 %v866, %v864
        %v893 = vpack.c.b16 %v869, %v867
        %v894 = vpack.c.b16 %v870, %v868
        %v895 = vpack.c.b16 %v873, %v871
        %v896 = vpack.c.b16 %v874, %v872
        %v897 = vpack.c.b16 %v877, %v875
        %v898 = vpack.c.b16 %v878, %v876
        %v899 = vpack.c.b16 %v881, %v879
        %v900 = vpack.c.b16 %v882, %v880
        %v901 = vpack.c.b16 %v885, %v883
        %v902 = vpack.c.b16 %v886, %v884
        %919 = vmatprep.subr.bf16.mxu0 0
        %920 = vmatpush1.bf16.msra.mxu0 %v798
        %921 = vmatprep.subr.bf16.mxu0 0
        %922 = vmatpush1.bf16.msra.mxu0 %v797
        %923 = vmatprep.subr.bf16.mxu0 0
        %924 = vmatpush1.bf16.msra.mxu0 %v796
        %925 = vmatprep.subr.bf16.mxu0 0
        %926 = vmatpush1.bf16.msra.mxu0 %v795
        %927 = vmatprep.subr.bf16.mxu0 0
        %928 = vmatpush1.bf16.msra.mxu0 %v794
        %929 = vmatprep.subr.bf16.mxu0 0
        %930 = vmatpush1.bf16.msra.mxu0 %v793
        %931 = vmatprep.subr.bf16.mxu0 0
        %932 = vmatpush1.bf16.msra.mxu0 %v792
        %933 = vmatprep.subr.bf16.mxu0 0
        %934 = vmatpush1.bf16.msra.mxu0 %v791
        %935 = vmatprep.subr.bf16.mxu0 0
        %936 = vmatpush2.bf16.msra.mxu0 %v806
        %937 = vmatprep.subr.bf16.mxu0 0
        %938 = vmatpush2.bf16.msra.mxu0 %v805
        %939 = vmatprep.subr.bf16.mxu0 0
        %940 = vmatpush2.bf16.msra.mxu0 %v804
        %941 = vmatprep.subr.bf16.mxu0 0
        %942 = vmatpush2.bf16.msra.mxu0 %v803
        %943 = vmatprep.subr.bf16.mxu0 0
        %944 = vmatpush2.bf16.msra.mxu0 %v802
        %945 = vmatprep.subr.bf16.mxu0 0
        %946 = vmatpush2.bf16.msra.mxu0 %v801
        %947 = vmatprep.subr.bf16.mxu0 0
        %948 = vmatpush2.bf16.msra.mxu0 %v800
        %949 = vmatprep.subr.bf16.mxu0 0
        %950 = vmatpush2.bf16.msra.mxu0 %v799
        %951 = vmatprep.mubr.bf16.mxu0 %v888
        %952 = vmatmul.mubr.bf16.gmra.mxu0 %v887
        %v953 = vpop.f32.mrf.mxu0
        %v954 = vadd.f32 0.0, %v953
        %v955 = vpop.f32.mrf.mxu0
        %v956 = vpop.f32.mrf.mxu0
        %v957 = vadd.f32 0.0, %v956
        %v958 = vpop.f32.mrf.mxu0
        %959 = vmatprep.mubr.bf16.mxu0 %v890
        %960 = vmatmul.mubr.bf16.gmra.mxu0 %v889
        %v961 = vpop.f32.mrf.mxu0
        %v962 = vadd.f32 0.0, %v961
        %v963 = vpop.f32.mrf.mxu0
        %v964 = vpop.f32.mrf.mxu0
        %v965 = vadd.f32 0.0, %v964
        %v966 = vpop.f32.mrf.mxu0
        %967 = vmatprep.mubr.bf16.mxu0 %v892
        %968 = vmatmul.mubr.bf16.gmra.mxu0 %v891
        %v969 = vpop.f32.mrf.mxu0
        %v970 = vadd.f32 0.0, %v969
        %v971 = vpop.f32.mrf.mxu0
        %v972 = vpop.f32.mrf.mxu0
        %v973 = vadd.f32 0.0, %v972
        %v974 = vpop.f32.mrf.mxu0
        %975 = vmatprep.mubr.bf16.mxu0 %v894
        %976 = vmatmul.mubr.bf16.gmra.mxu0 %v893
        %v977 = vpop.f32.mrf.mxu0
        %v978 = vadd.f32 0.0, %v977
        %v979 = vpop.f32.mrf.mxu0
        %v980 = vpop.f32.mrf.mxu0
        %v981 = vadd.f32 0.0, %v980
        %v982 = vpop.f32.mrf.mxu0
        %983 = vmatprep.mubr.bf16.mxu0 %v896
        %984 = vmatmul.mubr.bf16.gmra.mxu0 %v895
        %v985 = vpop.f32.mrf.mxu0
        %v986 = vadd.f32 0.0, %v985
        %v987 = vpop.f32.mrf.mxu0
        %v988 = vpop.f32.mrf.mxu0
        %v989 = vadd.f32 0.0, %v988
        %v990 = vpop.f32.mrf.mxu0
        %991 = vmatprep.mubr.bf16.mxu0 %v898
        %992 = vmatmul.mubr.bf16.gmra.mxu0 %v897
        %v993 = vpop.f32.mrf.mxu0
        %v994 = vadd.f32 0.0, %v993
        %v995 = vpop.f32.mrf.mxu0
        %v996 = vpop.f32.mrf.mxu0
        %v997 = vadd.f32 0.0, %v996
        %v998 = vpop.f32.mrf.mxu0
        %999 = vmatprep.mubr.bf16.mxu0 %v900
        %1000 = vmatmul.mubr.bf16.gmra.mxu0 %v899
        %v1001 = vpop.f32.mrf.mxu0
        %v1002 = vadd.f32 0.0, %v1001
        %v1003 = vpop.f32.mrf.mxu0
        %v1004 = vpop.f32.mrf.mxu0
        %v1005 = vadd.f32 0.0, %v1004
        %v1006 = vpop.f32.mrf.mxu0
        %1007 = vmatprep.mubr.bf16.mxu0 %v902
        %1008 = vmatmul.mubr.bf16.gmra.mxu0 %v901
        %v1009 = vpop.f32.mrf.mxu0
        %v1010 = vadd.f32 0.0, %v1009
        %v1011 = vpop.f32.mrf.mxu0
        %v1012 = vpop.f32.mrf.mxu0
        %v1013 = vadd.f32 0.0, %v1012
        %v1014 = vpop.f32.mrf.mxu0
        %1015 = vdwg.mxu0
        %v1016 = vadd.f32 %v823, %v954
        %v1017 = vadd.f32 %v824, %v957
        %v1018 = vadd.f32 %v825, %v962
        %v1019 = vadd.f32 %v826, %v965
        %v1020 = vadd.f32 %v827, %v970
        %v1021 = vadd.f32 %v828, %v973
        %v1022 = vadd.f32 %v829, %v978
        %v1023 = vadd.f32 %v830, %v981
        %v1024 = vadd.f32 %v831, %v986
        %v1025 = vadd.f32 %v832, %v989
        %v1026 = vadd.f32 %v833, %v994
        %v1027 = vadd.f32 %v834, %v997
        %v1028 = vadd.f32 %v835, %v1002
        %v1029 = vadd.f32 %v836, %v1005
        %v1030 = vadd.f32 %v837, %v1010
        %v1031 = vadd.f32 %v838, %v1013
        %1032 = vst [vmem:[#allocation2] sm:$0xff] %v1016
        %1033 = vst [vmem:[#allocation2 + $0x8] sm:$0xff] %v1017
        %1034 = vst [vmem:[#allocation2 + $0x10] sm:$0xff] %v1018
        %1035 = vst [vmem:[#allocation2 + $0x18] sm:$0xff] %v1019
        %1036 = vst [vmem:[#allocation2 + $0x20] sm:$0xff] %v1020
        %1037 = vst [vmem:[#allocation2 + $0x28] sm:$0xff] %v1021
        %1038 = vst [vmem:[#allocation2 + $0x30] sm:$0xff] %v1022
        %1039 = vst [vmem:[#allocation2 + $0x38] sm:$0xff] %v1023
        %1040 = vst [vmem:[#allocation2 + $0x40] sm:$0xff] %v1024
        %1041 = vst [vmem:[#allocation2 + $0x48] sm:$0xff] %v1025
        %1042 = vst [vmem:[#allocation2 + $0x50] sm:$0xff] %v1026
        %1043 = vst [vmem:[#allocation2 + $0x58] sm:$0xff] %v1027
        %1044 = vst [vmem:[#allocation2 + $0x60] sm:$0xff] %v1028
        %1045 = vst [vmem:[#allocation2 + $0x68] sm:$0xff] %v1029
        %1046 = vst [vmem:[#allocation2 + $0x70] sm:$0xff] %v1030
        %1047 = vst [vmem:[#allocation2 + $0x78] sm:$0xff] %v1031
        %p1048 = scmp.eq.s32.totalorder %s25, 1
        // Predicated region
        $region87: #{tpu_custom_call.1} parent=77 // pred_check
          %p1049 = pneg %p1048
        $region88: #{tpu_custom_call.1} parent=77 // pred_check_branch
          %1051 = sbr.rel (%p1049) target = $region90
        $region89: #{tpu_custom_call.1} parent=77 // pred_region
          %v1052 = vld [vmem:[%s421] sm:$0xf]
          %v1053 = vld [vmem:[%s421 + $0x4] sm:$0xf]
          %v1054 = vld [vmem:[%s421 + $0x8] sm:$0xf]
          %v1055 = vld [vmem:[%s421 + $0xc] sm:$0xf]
          %v1056 = vld [vmem:[%s421 + $0x10] sm:$0xf]
          %v1057 = vld [vmem:[%s421 + $0x14] sm:$0xf]
          %v1058 = vld [vmem:[%s421 + $0x18] sm:$0xf]
          %v1059 = vld [vmem:[%s421 + $0x1c] sm:$0xf]
          %v1060 = vld [vmem:[%s421 + $0x20] sm:$0xf]
          %v1061 = vld [vmem:[%s421 + $0x24] sm:$0xf]
          %v1062 = vld [vmem:[%s421 + $0x28] sm:$0xf]
          %v1063 = vld [vmem:[%s421 + $0x2c] sm:$0xf]
          %v1064 = vld [vmem:[%s421 + $0x30] sm:$0xf]
          %v1065 = vld [vmem:[%s421 + $0x34] sm:$0xf]
          %v1066 = vld [vmem:[%s421 + $0x38] sm:$0xf]
          %v1067 = vld [vmem:[%s421 + $0x3c] sm:$0xf]
          %v1068 = vld [vmem:[%s2] sm:$0xf]
          %v1069 = vld [vmem:[%s2 + $0x4] sm:$0xf]
          %v1070 = vld [vmem:[%s2 + $0x8] sm:$0xf]
          %v1071 = vld [vmem:[%s2 + $0xc] sm:$0xf]
          %v1088 = vunpack.c.l.b16 %v1052
          %v1089 = vunpack.c.l.b16 %v1053
          %v1090 = vunpack.c.l.b16 %v1054
          %v1091 = vunpack.c.l.b16 %v1055
          %v1092 = vunpack.c.l.b16 %v1056
          %v1093 = vunpack.c.l.b16 %v1057
          %v1094 = vunpack.c.l.b16 %v1058
          %v1095 = vunpack.c.l.b16 %v1059
          %v1096 = vunpack.c.l.b16 %v1060
          %v1097 = vunpack.c.l.b16 %v1061
          %v1098 = vunpack.c.l.b16 %v1062
          %v1099 = vunpack.c.l.b16 %v1063
          %v1100 = vunpack.c.l.b16 %v1064
          %v1101 = vunpack.c.l.b16 %v1065
          %v1102 = vunpack.c.l.b16 %v1066
          %v1103 = vunpack.c.l.b16 %v1067
          %v1104 = vpack.c.b16 %v1089, %v1088
          %v1105 = vpack.c.b16 %v1091, %v1090
          %v1106 = vpack.c.b16 %v1093, %v1092
          %v1107 = vpack.c.b16 %v1095, %v1094
          %v1108 = vpack.c.b16 %v1097, %v1096
          %v1109 = vpack.c.b16 %v1099, %v1098
          %v1110 = vpack.c.b16 %v1101, %v1100
          %v1111 = vpack.c.b16 %v1103, %v1102
          %v1116 = vunpack.c.l.b16 %v1068
          %v1117 = vunpack.c.l.b16 %v1069
          %v1118 = vunpack.c.l.b16 %v1070
          %v1119 = vunpack.c.l.b16 %v1071
          %v1120 = vpack.c.b16 %v1117, %v1116
          %v1121 = vpack.c.b16 %v1119, %v1118
          %v1125 = vsel %vm581, %v1104, 0
          %v1128 = vsel %vm581, %v1105, 0
          %v1131 = vsel %vm581, %v1106, 0
          %v1134 = vsel %vm581, %v1107, 0
          %v1137 = vsel %vm581, %v1108, 0
          %v1140 = vsel %vm581, %v1109, 0
          %v1143 = vsel %vm581, %v1110, 0
          %v1146 = vsel %vm581, %v1111, 0
          %1148 = vmatprep.subr.bf16.mxu0 0
          %1149 = vmatpush1.bf16.msra.mxu0 0
          %1150 = vmatprep.subr.bf16.mxu0 0
          %1151 = vmatpush1.bf16.msra.mxu0 0
          %1152 = vmatprep.subr.bf16.mxu0 0
          %1153 = vmatpush1.bf16.msra.mxu0 0
          %1154 = vmatprep.subr.bf16.mxu0 0
          %1155 = vmatpush1.bf16.msra.mxu0 0
          %1156 = vmatprep.subr.bf16.mxu0 0
          %1157 = vmatpush1.bf16.msra.mxu0 0
          %1158 = vmatprep.subr.bf16.mxu0 0
          %1159 = vmatpush1.bf16.msra.mxu0 0
          %1160 = vmatprep.subr.bf16.mxu0 0
          %1161 = vmatpush1.bf16.msra.mxu0 %v1121
          %1162 = vmatprep.subr.bf16.mxu0 0
          %1163 = vmatpush1.bf16.msra.mxu0 %v1120
          %1164 = vmatprep.subr.bf16.mxu0 0
          %1165 = vmatpush2.bf16.msra.mxu0 0
          %1166 = vmatprep.subr.bf16.mxu0 0
          %1167 = vmatpush2.bf16.msra.mxu0 0
          %1168 = vmatprep.subr.bf16.mxu0 0
          %1169 = vmatpush2.bf16.msra.mxu0 0
          %1170 = vmatprep.subr.bf16.mxu0 0
          %1171 = vmatpush2.bf16.msra.mxu0 0
          %1172 = vmatprep.subr.bf16.mxu0 0
          %1173 = vmatpush2.bf16.msra.mxu0 0
          %1174 = vmatprep.subr.bf16.mxu0 0
          %1175 = vmatpush2.bf16.msra.mxu0 0
          %1176 = vmatprep.subr.bf16.mxu0 0
          %1177 = vmatpush2.bf16.msra.mxu0 0
          %1178 = vmatprep.subr.bf16.mxu0 0
          %1179 = vmatpush2.bf16.msra.mxu0 0
          %1180 = vmatprep.mubr.bf16.mxu0 0
          %1181 = vmatmul.mubr.bf16.gmra.mxu0 %v1125
          %v1182 = vpop.f32.mrf.mxu0
          %v1183 = vadd.f32 0.0, %v1182
          %v1184 = vpop.f32.mrf.mxu0
          %v1185 = vpop.f32.mrf.mxu0
          %v1186 = vadd.f32 0.0, %v1185
          %v1187 = vpop.f32.mrf.mxu0
          %1188 = vmatprep.mubr.bf16.mxu0 0
          %1189 = vmatmul.mubr.bf16.gmra.mxu0 %v1128
          %v1190 = vpop.f32.mrf.mxu0
          %v1191 = vadd.f32 0.0, %v1190
          %v1192 = vpop.f32.mrf.mxu0
          %v1193 = vpop.f32.mrf.mxu0
          %v1194 = vadd.f32 0.0, %v1193
          %v1195 = vpop.f32.mrf.mxu0
          %1196 = vmatprep.mubr.bf16.mxu0 0
          %1197 = vmatmul.mubr.bf16.gmra.mxu0 %v1131
          %v1198 = vpop.f32.mrf.mxu0
          %v1199 = vadd.f32 0.0, %v1198
          %v1200 = vpop.f32.mrf.mxu0
          %v1201 = vpop.f32.mrf.mxu0
          %v1202 = vadd.f32 0.0, %v1201
          %v1203 = vpop.f32.mrf.mxu0
          %1204 = vmatprep.mubr.bf16.mxu0 0
          %1205 = vmatmul.mubr.bf16.gmra.mxu0 %v1134
          %v1206 = vpop.f32.mrf.mxu0
          %v1207 = vadd.f32 0.0, %v1206
          %v1208 = vpop.f32.mrf.mxu0
          %v1209 = vpop.f32.mrf.mxu0
          %v1210 = vadd.f32 0.0, %v1209
          %v1211 = vpop.f32.mrf.mxu0
          %1212 = vmatprep.mubr.bf16.mxu0 0
          %1213 = vmatmul.mubr.bf16.gmra.mxu0 %v1137
          %v1214 = vpop.f32.mrf.mxu0
          %v1215 = vadd.f32 0.0, %v1214
          %v1216 = vpop.f32.mrf.mxu0
          %v1217 = vpop.f32.mrf.mxu0
          %v1218 = vadd.f32 0.0, %v1217
          %v1219 = vpop.f32.mrf.mxu0
          %1220 = vmatprep.mubr.bf16.mxu0 0
          %1221 = vmatmul.mubr.bf16.gmra.mxu0 %v1140
          %v1222 = vpop.f32.mrf.mxu0
          %v1223 = vadd.f32 0.0, %v1222
          %v1224 = vpop.f32.mrf.mxu0
          %v1225 = vpop.f32.mrf.mxu0
          %v1226 = vadd.f32 0.0, %v1225
          %v1227 = vpop.f32.mrf.mxu0
          %1228 = vmatprep.mubr.bf16.mxu0 0
          %1229 = vmatmul.mubr.bf16.gmra.mxu0 %v1143
          %v1230 = vpop.f32.mrf.mxu0
          %v1231 = vadd.f32 0.0, %v1230
          %v1232 = vpop.f32.mrf.mxu0
          %v1233 = vpop.f32.mrf.mxu0
          %v1234 = vadd.f32 0.0, %v1233
          %v1235 = vpop.f32.mrf.mxu0
          %1236 = vmatprep.mubr.bf16.mxu0 0
          %1237 = vmatmul.mubr.bf16.gmra.mxu0 %v1146
          %v1238 = vpop.f32.mrf.mxu0
          %v1239 = vadd.f32 0.0, %v1238
          %v1240 = vpop.f32.mrf.mxu0
          %v1241 = vpop.f32.mrf.mxu0
          %v1242 = vadd.f32 0.0, %v1241
          %v1243 = vpop.f32.mrf.mxu0
          %1244 = vdwg.mxu0
          %v1245 = vld [vmem:[#allocation2] sm:$0xff]
          %v1246 = vld [vmem:[#allocation2 + $0x8] sm:$0xff]
          %v1247 = vld [vmem:[#allocation2 + $0x10] sm:$0xff]
          %v1248 = vld [vmem:[#allocation2 + $0x18] sm:$0xff]
          %v1249 = vld [vmem:[#allocation2 + $0x20] sm:$0xff]
          %v1250 = vld [vmem:[#allocation2 + $0x28] sm:$0xff]
          %v1251 = vld [vmem:[#allocation2 + $0x30] sm:$0xff]
          %v1252 = vld [vmem:[#allocation2 + $0x38] sm:$0xff]
          %v1253 = vld [vmem:[#allocation2 + $0x40] sm:$0xff]
          %v1254 = vld [vmem:[#allocation2 + $0x48] sm:$0xff]
          %v1255 = vld [vmem:[#allocation2 + $0x50] sm:$0xff]
          %v1256 = vld [vmem:[#allocation2 + $0x58] sm:$0xff]
          %v1257 = vld [vmem:[#allocation2 + $0x60] sm:$0xff]
          %v1258 = vld [vmem:[#allocation2 + $0x68] sm:$0xff]
          %v1259 = vld [vmem:[#allocation2 + $0x70] sm:$0xff]
          %v1260 = vld [vmem:[#allocation2 + $0x78] sm:$0xff]
          %v1261 = vld [vmem:[%s429] sm:$0xff]
          %v1262 = vld [vmem:[%s429 + $0x8] sm:$0xff]
          %v1263 = vld [vmem:[%s429 + $0x10] sm:$0xff]
          %v1264 = vld [vmem:[%s429 + $0x18] sm:$0xff]
          %v1265 = vld [vmem:[%s429 + $0x20] sm:$0xff]
          %v1266 = vld [vmem:[%s429 + $0x28] sm:$0xff]
          %v1267 = vld [vmem:[%s429 + $0x30] sm:$0xff]
          %v1268 = vld [vmem:[%s429 + $0x38] sm:$0xff]
          %v1269 = vld [vmem:[%s429 + $0x40] sm:$0xff]
          %v1270 = vld [vmem:[%s429 + $0x48] sm:$0xff]
          %v1271 = vld [vmem:[%s429 + $0x50] sm:$0xff]
          %v1272 = vld [vmem:[%s429 + $0x58] sm:$0xff]
          %v1273 = vld [vmem:[%s429 + $0x60] sm:$0xff]
          %v1274 = vld [vmem:[%s429 + $0x68] sm:$0xff]
          %v1275 = vld [vmem:[%s429 + $0x70] sm:$0xff]
          %v1276 = vld [vmem:[%s429 + $0x78] sm:$0xff]
          %1278 = vset.pattern.permute.xlu0 0
          %1279 = vperm.xlu0 %1278, %v1261
          %v1280 = vpop.permute.xlu0 %1279
          %1283 = vset.pattern.permute.xlu0 0
          %1284 = vperm.xlu0 %1283, %v1262
          %v1285 = vpop.permute.xlu0 %1284
          %1288 = vset.pattern.permute.xlu0 0
          %1289 = vperm.xlu0 %1288, %v1263
          %v1290 = vpop.permute.xlu0 %1289
          %1293 = vset.pattern.permute.xlu0 0
          %1294 = vperm.xlu0 %1293, %v1264
          %v1295 = vpop.permute.xlu0 %1294
          %1298 = vset.pattern.permute.xlu0 0
          %1299 = vperm.xlu0 %1298, %v1265
          %v1300 = vpop.permute.xlu0 %1299
          %1303 = vset.pattern.permute.xlu0 0
          %1304 = vperm.xlu0 %1303, %v1266
          %v1305 = vpop.permute.xlu0 %1304
          %1308 = vset.pattern.permute.xlu0 0
          %1309 = vperm.xlu0 %1308, %v1267
          %v1310 = vpop.permute.xlu0 %1309
          %1313 = vset.pattern.permute.xlu0 0
          %1314 = vperm.xlu0 %1313, %v1268
          %v1315 = vpop.permute.xlu0 %1314
          %1318 = vset.pattern.permute.xlu0 0
          %1319 = vperm.xlu0 %1318, %v1269
          %v1320 = vpop.permute.xlu0 %1319
          %1323 = vset.pattern.permute.xlu0 0
          %1324 = vperm.xlu0 %1323, %v1270
          %v1325 = vpop.permute.xlu0 %1324
          %1328 = vset.pattern.permute.xlu0 0
          %1329 = vperm.xlu0 %1328, %v1271
          %v1330 = vpop.permute.xlu0 %1329
          %1333 = vset.pattern.permute.xlu0 0
          %1334 = vperm.xlu0 %1333, %v1272
          %v1335 = vpop.permute.xlu0 %1334
          %1338 = vset.pattern.permute.xlu0 0
          %1339 = vperm.xlu0 %1338, %v1273
          %v1340 = vpop.permute.xlu0 %1339
          %1343 = vset.pattern.permute.xlu0 0
          %1344 = vperm.xlu0 %1343, %v1274
          %v1345 = vpop.permute.xlu0 %1344
          %1348 = vset.pattern.permute.xlu0 0
          %1349 = vperm.xlu0 %1348, %v1275
          %v1350 = vpop.permute.xlu0 %1349
          %1353 = vset.pattern.permute.xlu0 0
          %1354 = vperm.xlu0 %1353, %v1276
          %v1355 = vpop.permute.xlu0 %1354
          %v1357 = vmul.f32 %v1245, %v1280
          %v1358 = vmul.f32 %v1246, %v1285
          %v1359 = vmul.f32 %v1247, %v1290
          %v1360 = vmul.f32 %v1248, %v1295
          %v1361 = vmul.f32 %v1249, %v1300
          %v1362 = vmul.f32 %v1250, %v1305
          %v1363 = vmul.f32 %v1251, %v1310
          %v1364 = vmul.f32 %v1252, %v1315
          %v1365 = vmul.f32 %v1253, %v1320
          %v1366 = vmul.f32 %v1254, %v1325
          %v1367 = vmul.f32 %v1255, %v1330
          %v1368 = vmul.f32 %v1256, %v1335
          %v1369 = vmul.f32 %v1257, %v1340
          %v1370 = vmul.f32 %v1258, %v1345
          %v1371 = vmul.f32 %v1259, %v1350
          %v1372 = vmul.f32 %v1260, %v1355
          %v1373 = vsub.f32 %v1183, %v1357
          %v1374 = vsub.f32 %v1186, %v1358
          %v1375 = vsub.f32 %v1191, %v1359
          %v1376 = vsub.f32 %v1194, %v1360
          %v1377 = vsub.f32 %v1199, %v1361
          %v1378 = vsub.f32 %v1202, %v1362
          %v1379 = vsub.f32 %v1207, %v1363
          %v1380 = vsub.f32 %v1210, %v1364
          %v1381 = vsub.f32 %v1215, %v1365
          %v1382 = vsub.f32 %v1218, %v1366
          %v1383 = vsub.f32 %v1223, %v1367
          %v1384 = vsub.f32 %v1226, %v1368
          %v1385 = vsub.f32 %v1231, %v1369
          %v1386 = vsub.f32 %v1234, %v1370
          %v1387 = vsub.f32 %v1239, %v1371
          %v1388 = vsub.f32 %v1242, %v1372
          %v1389 = vld [vmem:[%s5] sm:$0x1]
          %v1391 = vlaneseq
          %v1392 = vshrl.u32 %v1391, 7
          %v1393 = vsub.s32 0, %v1392
          %v1394 = vrot.slane %v1389, %v1393
          %v1396 = vadd.f32 %v1373, %v1394
          %v1397 = vadd.f32 %v1374, %v1394
          %v1398 = vadd.f32 %v1375, %v1394
          %v1399 = vadd.f32 %v1376, %v1394
          %v1400 = vadd.f32 %v1377, %v1394
          %v1401 = vadd.f32 %v1378, %v1394
          %v1402 = vadd.f32 %v1379, %v1394
          %v1403 = vadd.f32 %v1380, %v1394
          %v1404 = vadd.f32 %v1381, %v1394
          %v1405 = vadd.f32 %v1382, %v1394
          %v1406 = vadd.f32 %v1383, %v1394
          %v1407 = vadd.f32 %v1384, %v1394
          %v1408 = vadd.f32 %v1385, %v1394
          %v1409 = vadd.f32 %v1386, %v1394
          %v1410 = vadd.f32 %v1387, %v1394
          %v1411 = vadd.f32 %v1388, %v1394
          %1412 = vst [vmem:[%s410] sm:$0xff] %v1396
          %1413 = vst [vmem:[%s410 + $0x8] sm:$0xff] %v1397
          %1414 = vst [vmem:[%s410 + $0x10] sm:$0xff] %v1398
          %1415 = vst [vmem:[%s410 + $0x18] sm:$0xff] %v1399
          %1416 = vst [vmem:[%s410 + $0x20] sm:$0xff] %v1400
          %1417 = vst [vmem:[%s410 + $0x28] sm:$0xff] %v1401
          %1418 = vst [vmem:[%s410 + $0x30] sm:$0xff] %v1402
          %1419 = vst [vmem:[%s410 + $0x38] sm:$0xff] %v1403
          %1420 = vst [vmem:[%s410 + $0x40] sm:$0xff] %v1404
          %1421 = vst [vmem:[%s410 + $0x48] sm:$0xff] %v1405
          %1422 = vst [vmem:[%s410 + $0x50] sm:$0xff] %v1406
          %1423 = vst [vmem:[%s410 + $0x58] sm:$0xff] %v1407
          %1424 = vst [vmem:[%s410 + $0x60] sm:$0xff] %v1408
          %1425 = vst [vmem:[%s410 + $0x68] sm:$0xff] %v1409
          %1426 = vst [vmem:[%s410 + $0x70] sm:$0xff] %v1410
          %1427 = vst [vmem:[%s410 + $0x78] sm:$0xff] %v1411
        $region90: #{tpu_custom_call.1} parent=77 // pred_fallthru
          _
        %s1428 = sand.u32 %s188, 1
        %s1429 = scalar_lea.sflag [#allocation5], %s1428
        %s1430 = sand.u32 %s188, 1
        %s1431 = smul.addr %s1430, 128
        %s1432 = scalar_lea.vmem [#allocation4], %s1431
        // Predicated region
        $region91: #{tpu_custom_call.1} parent=77 // pred_check
          %p1433 = pneg %p198
        $region92: #{tpu_custom_call.1} parent=77 // pred_check_branch
          %1435 = sbr.rel (%p1433) target = $region94
        $region93: #{tpu_custom_call.1} parent=77 // pred_region
          %s1436 = smul.u32 16, %s24
          %s1438 = ssub.s32 2048, 2048
          %1439 = vsyncadd %s1429, %s1438
          %s1440 = smul.addr %s1436, 128
          %s1441 = scalar_lea.hbm %s6, %s1440
          %s1442 = sshll.u32 %s1432, 4
          %s1443 = int_to_ptr.vmem [resolvable:$true] %s1442
          %1448 = dma.vmem_to_hbm [thread:$0]  %s1443, 2048, %s1441, %s1429, 128, 128, 8
        $region94: #{tpu_custom_call.1} parent=77 // pred_fallthru
          _
      $region78: #{tpu_custom_call.1} parent=5 // pred_fallthru
        _
      %p1449 = scmp.le.s32.totalorder 2, %s15
      // Predicated region
      $region95: #{tpu_custom_call.1} parent=5 // pred_check
        %p1450 = pneg %p1449
      $region96: #{tpu_custom_call.1} parent=5 // pred_check_branch
        %1452 = sbr.rel (%p1450) target = $region98
      $region97: #{tpu_custom_call.1} parent=5 // pred_region
        %s1453 = ssub.s32 %s15, 2
        // Predicated region
        $region99: #{tpu_custom_call.1} parent=97 // pred_check
          %p1454 = pneg %p204
        $region100: #{tpu_custom_call.1} parent=97 // pred_check_branch
          %1456 = sbr.rel (%p1454) target = $region102
        $region101: #{tpu_custom_call.1} parent=97 // pred_region
          %s1457 = sand.u32 %s189, 1
          %s1458 = scalar_lea.sflag [#allocation5], %s1457
          %s1459 = sand.u32 %s189, 1
          %s1460 = smul.addr %s1459, 128
          %s1461 = scalar_lea.vmem [#allocation4], %s1460
          %1462 = dma.done %s1458, 2048
        $region102: #{tpu_custom_call.1} parent=97 // pred_fallthru
          _
      $region98: #{tpu_custom_call.1} parent=5 // pred_fallthru
        _
    $region6: #{tpu_custom_call.1} parent=1 // loop_footer
      %s19 = sadd.s32 1, %s15
    $region7: #{tpu_custom_call.1} parent=1 // loop_footer_branch
      %14 = sbr.rel target = $region3
    $region8: #{tpu_custom_call.1} parent=1 // loop_exit
      _
    %1463 = vsyncpa [#allocation5], 1
    %s1464 = scalar_lea.sflag [#allocation5], 1
    %1465 = vsyncpa %s1464, 1

</llo_original>
